<compile_context>
chip_gen: v7x
topology: tpu7x:2x2x1
jax: 0.10.0
libtpu: 0.0.40
codegen_flags: <defaults>
</compile_context>

<pallas_src>
import functools

import jax
import jax.numpy as jnp
from jax.experimental import pallas as pl
from jax.experimental.pallas import tpu as pltpu

INPUT_SIZE = 2
HIDDEN = 16


def _lstm_kernel(x_ref, wih_ref, whh_ref, b_ref, wlin_ref, blin_ref,
                 y_ref, gx_scr, hall_scr, h_scr, c_scr,
                 *, chunk_t, batch_p, hidden):
    H = hidden
    Bp = batch_p
    TB = chunk_t

    # --- h/c carry initialization on the first time-chunk. ---
    @pl.when(pl.program_id(0) == 0)
    def _():
        h_scr[...] = jnp.zeros_like(h_scr)
        c_scr[...] = jnp.zeros_like(c_scr)

    # --- Hoisted input projection for the whole chunk (one MXU matmul). ---
    # (TB*Bp, I) @ (I, 4H) + (1, 4H) -> (TB*Bp, 4H)
    gx_scr[...] = (
        jnp.dot(x_ref[...], wih_ref[...], preferred_element_type=jnp.float32)
        + b_ref[...])

    whh = whh_ref[...]  # (H, 4H), hoisted out of the time loop.

    # --- Sequential recurrence: only h_{t-1} @ W_hh on the serial path. ---
    def step(t, carry):
        h_prev, c_prev = carry
        row = pl.multiple_of(t * Bp, Bp)
        gx_t = gx_scr[pl.ds(row, Bp), :]                     # (Bp, 4H)
        gates = gx_t + jnp.dot(h_prev, whh,
                               preferred_element_type=jnp.float32)

        # Two full-width EUP passes, then static slices (PyTorch order i,f,g,o).
        sig = jax.nn.sigmoid(gates)
        tnh = jnp.tanh(gates)
        i_g = sig[:, 0 * H:1 * H]
        f_g = sig[:, 1 * H:2 * H]
        g_g = tnh[:, 2 * H:3 * H]
        o_g = sig[:, 3 * H:4 * H]

        c_new = f_g * c_prev + i_g * g_g
        h_new = o_g * jnp.tanh(c_new)

        hall_scr[pl.ds(row, Bp), :] = h_new                  # buffer h_t in VMEM
        return h_new, c_new

    h_fin, c_fin = jax.lax.fori_loop(
        0, TB, step, (h_scr[...], c_scr[...]), unroll=min(8, TB))
    h_scr[...] = h_fin                                       # carry to next chunk
    c_scr[...] = c_fin

    # --- One chunk-level output projection, emitted lane-dense. ---
    # y[0, t*Bp + b] = sum_h hall[t*Bp + b, h] * W_lin[0, h] + b_lin
    y = jax.lax.dot_general(
        wlin_ref[...], hall_scr[...],
        dimension_numbers=(((1,), (1,)), ((), ())),
        preferred_element_type=jnp.float32) + blin_ref[...]
    y_ref[...] = y                                           # (1, TB*Bp)


def lstm_forward(x, params, *, chunk_t=None):
    """x: (T, B, INPUT_SIZE) float32 -> (T, B, 1) float32."""
    T, B, I = x.shape
    H = HIDDEN
    wih_t, whh_t, b, wlin, blin = params

    # Pad batch to a multiple of 8 sublanes so per-step scratch slices are
    # tile-aligned (padded rows are computed but discarded).
    Bp = ((B + 7) // 8) * 8

    # Time-chunk size: ~512 sublane rows per chunk (lane-dense output blocks,
    # bounded VMEM scratch for long sequences), clamped to the sequence length.
    if chunk_t is None:
        chunk_t = min(T, max(1, 512 // Bp))
    TB = chunk_t
    num_chunks = pl.cdiv(T, TB)
    Tp = num_chunks * TB

    if Tp != T or Bp != B:
        # Padding is appended at the end, so real outputs are unaffected.
        x = jnp.pad(x, ((0, Tp - T), (0, Bp - B), (0, 0)))
    x2 = x.reshape(Tp * Bp, I)  # free, row-major contiguous

    kernel = functools.partial(_lstm_kernel, chunk_t=TB, batch_p=Bp, hidden=H)

    y = pl.pallas_call(
        kernel,
        out_shape=jax.ShapeDtypeStruct((1, Tp * Bp), jnp.float32),
        grid_spec=pltpu.PrefetchScalarGridSpec(
            num_scalar_prefetch=0,
            grid=(num_chunks,),  # serial recurrence across time chunks
            in_specs=[
                pl.BlockSpec((TB * Bp, I), lambda c: (c, 0)),   # x chunk
                pl.BlockSpec((I, 4 * H), lambda c: (0, 0)),     # W_ih^T (resident)
                pl.BlockSpec((H, 4 * H), lambda c: (0, 0)),     # W_hh^T (resident)
                pl.BlockSpec((1, 4 * H), lambda c: (0, 0)),     # b_ih + b_hh
                pl.BlockSpec((1, H), lambda c: (0, 0)),         # W_lin
                pl.BlockSpec((1, 1), lambda c: (0, 0)),         # b_lin
            ],
            out_specs=pl.BlockSpec((1, TB * Bp), lambda c: (0, c)),
            scratch_shapes=[
                pltpu.VMEM((TB * Bp, 4 * H), jnp.float32),      # gates_x for chunk
                pltpu.VMEM((TB * Bp, H), jnp.float32),          # h_t for chunk
                pltpu.VMEM((Bp, H), jnp.float32),               # h carry
                pltpu.VMEM((Bp, H), jnp.float32),               # c carry
            ],
        ),
        compiler_params=pltpu.CompilerParams(
            dimension_semantics=("arbitrary",)),
    )(x2, wih_t, whh_t, b, wlin, blin)

    return y.reshape(Tp, Bp, 1)[:T, :B, :]


def init_params(key):
    """Deterministic params matching PyTorch shapes (uniform(-k, k), k=1/sqrt(H))."""
    H, I = HIDDEN, INPUT_SIZE
    k = 1.0 / jnp.sqrt(jnp.float32(H))
    ks = jax.random.split(key, 6)
    w_ih = jax.random.uniform(ks[0], (4 * H, I), jnp.float32, -k, k)
    w_hh = jax.random.uniform(ks[1], (4 * H, H), jnp.float32, -k, k)
    b_ih = jax.random.uniform(ks[2], (4 * H,), jnp.float32, -k, k)
    b_hh = jax.random.uniform(ks[3], (4 * H,), jnp.float32, -k, k)
    w_lin = jax.random.uniform(ks[4], (1, H), jnp.float32, -k, k)
    b_lin = jax.random.uniform(ks[5], (1,), jnp.float32, -k, k)
    # Pre-transpose / pre-sum for the kernel.
    return (w_ih.T,                       # (I, 4H)
            w_hh.T,                       # (H, 4H)
            (b_ih + b_hh)[None, :],       # (1, 4H)
            w_lin,                        # (1, H)
            b_lin[None, :])               # (1, 1)


def lstm_reference(x, params):
    """Pure-JAX reference (lax.scan) for correctness checking."""
    wih_t, whh_t, b, wlin, blin = params
    H = HIDDEN
    B = x.shape[1]

    def step(carry, x_t):
        h, c = carry
        gates = x_t @ wih_t + h @ whh_t + b
        i = jax.nn.sigmoid(gates[:, 0 * H:1 * H])
        f = jax.nn.sigmoid(gates[:, 1 * H:2 * H])
        g = jnp.tanh(gates[:, 2 * H:3 * H])
        o = jax.nn.sigmoid(gates[:, 3 * H:4 * H])
        c_new = f * c + i * g
        h_new = o * jnp.tanh(c_new)
        return (h_new, c_new), h_new @ wlin.T + blin

    h0 = jnp.zeros((B, H), jnp.float32)
    c0 = jnp.zeros((B, H), jnp.float32)
    _, ys = jax.lax.scan(step, (h0, c0), x)
    return ys


if __name__ == "__main__":
    key = jax.random.PRNGKey(0)
    k_x, k_p = jax.random.split(key)

    T, B = 8, 4
    x = jax.random.normal(k_x, (T, B, INPUT_SIZE), jnp.float32)
    params = init_params(k_p)

    y = lstm_forward(x, params)
    y = jax.block_until_ready(y)

    y_ref = lstm_reference(x, params)
    assert y.shape == (T, B, 1)
    assert jnp.allclose(y, y_ref, atol=1e-4, rtol=1e-4), "mismatch vs reference"

    # Multi-chunk path (grid > 1) exercised as well.
    T2, B2 = 70, 3
    x2 = jax.random.normal(jax.random.PRNGKey(1), (T2, B2, INPUT_SIZE), jnp.float32)
    y2 = jax.block_until_ready(lstm_forward(x2, params, chunk_t=16))
    y2_ref = lstm_reference(x2, params)
    assert y2.shape == (T2, B2, 1)
    assert jnp.allclose(y2, y2_ref, atol=1e-4, rtol=1e-4), "mismatch vs reference (chunked)"

    print("KERNEL_OK")
</pallas_src>

<mosaic_0001>
module attributes {stable_mosaic.version = 11 : i64} {
  func.func @_lstm_kernel(%arg0: i32, %arg1: memref<64x2xf32, #tpu.memory_space<vmem>>, %arg2: memref<2x64xf32, #tpu.memory_space<vmem>>, %arg3: memref<16x64xf32, #tpu.memory_space<vmem>>, %arg4: memref<1x64xf32, #tpu.memory_space<vmem>>, %arg5: memref<1x16xf32, #tpu.memory_space<vmem>>, %arg6: memref<1x1xf32, #tpu.memory_space<vmem>>, %arg7: memref<1x64xf32, #tpu.memory_space<vmem>>, %arg8: memref<64x64xf32, #tpu.memory_space<vmem>>, %arg9: memref<64x16xf32, #tpu.memory_space<vmem>>, %arg10: memref<8x16xf32, #tpu.memory_space<vmem>>, %arg11: memref<8x16xf32, #tpu.memory_space<vmem>>) attributes {dimension_semantics = [#tpu.dimension_semantics<arbitrary>], iteration_bounds = array<i64: 1>, scalar_prefetch = 0 : i64, scratch_operands = 4 : i64, tpu.core_type = #tpu.core_type<tc>, window_params = [{transform_indices = @transform_0, window_bounds = array<i64: 64, 2>}, {pipeline_mode = #tpu.pipeline_mode<synchronous>, transform_indices = @transform_1, window_bounds = array<i64: 2, 64>}, {pipeline_mode = #tpu.pipeline_mode<synchronous>, transform_indices = @transform_2, window_bounds = array<i64: 16, 64>}, {pipeline_mode = #tpu.pipeline_mode<synchronous>, transform_indices = @transform_3, window_bounds = array<i64: 1, 64>}, {pipeline_mode = #tpu.pipeline_mode<synchronous>, transform_indices = @transform_4, window_bounds = array<i64: 1, 16>}, {pipeline_mode = #tpu.pipeline_mode<synchronous>, transform_indices = @transform_5, window_bounds = array<i64: 1, 1>}, {transform_indices = @transform_6, window_bounds = array<i64: 1, 64>}]} {
    %c0_i32 = arith.constant 0 : i32
    %0 = arith.cmpi eq, %arg0, %c0_i32 : i32
    %1 = arith.extui %0 : i1 to i32
    %c0_i32_0 = arith.constant 0 : i32
    %2 = arith.cmpi ne, %1, %c0_i32_0 : i32
    scf.if %2 {
      %cst_68 = arith.constant 0.000000e+00 : f32
      %206 = vector.broadcast %cst_68 : f32 to vector<8x16xf32>
      %c0_69 = arith.constant 0 : index
      %c0_70 = arith.constant 0 : index
      %207 = vector.load %arg10[%c0_69, %c0_70] : memref<8x16xf32, #tpu.memory_space<vmem>>, vector<8x16xf32>
      tpu.vector_store %arg10[%c0_69, %c0_70], %206 {strides = array<i32>} : memref<8x16xf32, #tpu.memory_space<vmem>>, vector<8x16xf32>,
      %cst_71 = arith.constant 0.000000e+00 : f32
      %208 = vector.broadcast %cst_71 : f32 to vector<8x16xf32>
      %c0_72 = arith.constant 0 : index
      %c0_73 = arith.constant 0 : index
      %209 = vector.load %arg11[%c0_72, %c0_73] : memref<8x16xf32, #tpu.memory_space<vmem>>, vector<8x16xf32>
      tpu.vector_store %arg11[%c0_72, %c0_73], %208 {strides = array<i32>} : memref<8x16xf32, #tpu.memory_space<vmem>>, vector<8x16xf32>,
    } else {
    }
    %c0 = arith.constant 0 : index
    %c0_1 = arith.constant 0 : index
    %3 = vector.load %arg1[%c0, %c0_1] : memref<64x2xf32, #tpu.memory_space<vmem>>, vector<64x2xf32>
    %c0_2 = arith.constant 0 : index
    %c0_3 = arith.constant 0 : index
    %4 = vector.load %arg2[%c0_2, %c0_3] : memref<2x64xf32, #tpu.memory_space<vmem>>, vector<2x64xf32>
    %cst = arith.constant dense<0.000000e+00> : vector<64x64xf32>
    %5 = tpu.matmul %3, %4, %cst {dimension_numbers = #tpu.dot_dimension_numbers<[1], [0], [0], [1], [0, 0, 1, 1], [], []>} : vector<64x2xf32>, vector<2x64xf32>, vector<64x64xf32> -> vector<64x64xf32>
    %c0_4 = arith.constant 0 : index
    %c0_5 = arith.constant 0 : index
    %6 = vector.load %arg4[%c0_4, %c0_5] : memref<1x64xf32, #tpu.memory_space<vmem>>, vector<1x64xf32>
    %7 = vector.broadcast %6 : vector<1x64xf32> to vector<64x64xf32>
    %8 = arith.addf %5, %7 : vector<64x64xf32>
    %c0_6 = arith.constant 0 : index
    %c0_7 = arith.constant 0 : index
    %9 = vector.load %arg8[%c0_6, %c0_7] : memref<64x64xf32, #tpu.memory_space<vmem>>, vector<64x64xf32>
    tpu.vector_store %arg8[%c0_6, %c0_7], %8 {strides = array<i32>} : memref<64x64xf32, #tpu.memory_space<vmem>>, vector<64x64xf32>,
    %c0_8 = arith.constant 0 : index
    %c0_9 = arith.constant 0 : index
    %10 = vector.load %arg3[%c0_8, %c0_9] : memref<16x64xf32, #tpu.memory_space<vmem>>, vector<16x64xf32>
    %c0_10 = arith.constant 0 : index
    %c0_11 = arith.constant 0 : index
    %11 = vector.load %arg10[%c0_10, %c0_11] : memref<8x16xf32, #tpu.memory_space<vmem>>, vector<8x16xf32>
    %c0_12 = arith.constant 0 : index
    %c0_13 = arith.constant 0 : index
    %12 = vector.load %arg11[%c0_12, %c0_13] : memref<8x16xf32, #tpu.memory_space<vmem>>, vector<8x16xf32>
    %c0_i32_14 = arith.constant 0 : i32
    %c8_i32 = arith.constant 8 : i32
    %13 = arith.muli %c0_i32_14, %c8_i32 : i32
    %14 = tpu.assume_multiple %13, 8 : i32
    %15 = arith.index_cast %14 : i32 to index
    %c0_15 = arith.constant 0 : index
    %16 = vector.load %arg8[%15, %c0_15] : memref<64x64xf32, #tpu.memory_space<vmem>>, vector<8x64xf32>
    %cst_16 = arith.constant dense<0.000000e+00> : vector<8x64xf32>
    %17 = tpu.matmul %11, %10, %cst_16 {dimension_numbers = #tpu.dot_dimension_numbers<[1], [0], [0], [1], [0, 0, 1, 1], [], []>} : vector<8x16xf32>, vector<16x64xf32>, vector<8x64xf32> -> vector<8x64xf32>
    %18 = arith.addf %16, %17 : vector<8x64xf32>
    %19 = arith.negf %18 : vector<8x64xf32>
    %20 = math.exp %19 : vector<8x64xf32>
    %cst_17 = arith.constant 1.000000e+00 : f32
    %21 = vector.broadcast %cst_17 : f32 to vector<8x64xf32>
    %22 = arith.addf %21, %20 : vector<8x64xf32>
    %23 = arith.divf %21, %22 : vector<8x64xf32>
    %24 = math.tanh %18 : vector<8x64xf32>
    %25 = vector.extract_strided_slice %23 {offsets = [0, 0], sizes = [8, 16], strides = [1, 1]} : vector<8x64xf32> to vector<8x16xf32>
    %26 = vector.extract_strided_slice %23 {offsets = [0, 16], sizes = [8, 16], strides = [1, 1]} : vector<8x64xf32> to vector<8x16xf32>
    %27 = vector.extract_strided_slice %24 {offsets = [0, 32], sizes = [8, 16], strides = [1, 1]} : vector<8x64xf32> to vector<8x16xf32>
    %28 = vector.extract_strided_slice %23 {offsets = [0, 48], sizes = [8, 16], strides = [1, 1]} : vector<8x64xf32> to vector<8x16xf32>
    %29 = arith.mulf %26, %12 : vector<8x16xf32>
    %30 = arith.mulf %25, %27 : vector<8x16xf32>
    %31 = arith.addf %29, %30 : vector<8x16xf32>
    %32 = math.tanh %31 : vector<8x16xf32>
    %33 = arith.mulf %28, %32 : vector<8x16xf32>
    %34 = arith.index_cast %14 : i32 to index
    %c0_18 = arith.constant 0 : index
    %35 = vector.load %arg9[%34, %c0_18] : memref<64x16xf32, #tpu.memory_space<vmem>>, vector<8x16xf32>
    tpu.vector_store %arg9[%34, %c0_18], %33 {strides = array<i32>} : memref<64x16xf32, #tpu.memory_space<vmem>>, vector<8x16xf32>,
    %c1_i32 = arith.constant 1 : i32
    %c8_i32_19 = arith.constant 8 : i32
    %36 = arith.muli %c1_i32, %c8_i32_19 : i32
    %37 = tpu.assume_multiple %36, 8 : i32
    %38 = arith.index_cast %37 : i32 to index
    %c0_20 = arith.constant 0 : index
    %39 = vector.load %arg8[%38, %c0_20] : memref<64x64xf32, #tpu.memory_space<vmem>>, vector<8x64xf32>
    %cst_21 = arith.constant dense<0.000000e+00> : vector<8x64xf32>
    %40 = tpu.matmul %33, %10, %cst_21 {dimension_numbers = #tpu.dot_dimension_numbers<[1], [0], [0], [1], [0, 0, 1, 1], [], []>} : vector<8x16xf32>, vector<16x64xf32>, vector<8x64xf32> -> vector<8x64xf32>
    %41 = arith.addf %39, %40 : vector<8x64xf32>
    %42 = arith.negf %41 : vector<8x64xf32>
    %43 = math.exp %42 : vector<8x64xf32>
    %cst_22 = arith.constant 1.000000e+00 : f32
    %44 = vector.broadcast %cst_22 : f32 to vector<8x64xf32>
    %45 = arith.addf %44, %43 : vector<8x64xf32>
    %46 = arith.divf %44, %45 : vector<8x64xf32>
    %47 = math.tanh %41 : vector<8x64xf32>
    %48 = vector.extract_strided_slice %46 {offsets = [0, 0], sizes = [8, 16], strides = [1, 1]} : vector<8x64xf32> to vector<8x16xf32>
    %49 = vector.extract_strided_slice %46 {offsets = [0, 16], sizes = [8, 16], strides = [1, 1]} : vector<8x64xf32> to vector<8x16xf32>
    %50 = vector.extract_strided_slice %47 {offsets = [0, 32], sizes = [8, 16], strides = [1, 1]} : vector<8x64xf32> to vector<8x16xf32>
    %51 = vector.extract_strided_slice %46 {offsets = [0, 48], sizes = [8, 16], strides = [1, 1]} : vector<8x64xf32> to vector<8x16xf32>
    %52 = arith.mulf %49, %31 : vector<8x16xf32>
    %53 = arith.mulf %48, %50 : vector<8x16xf32>
    %54 = arith.addf %52, %53 : vector<8x16xf32>
    %55 = math.tanh %54 : vector<8x16xf32>
    %56 = arith.mulf %51, %55 : vector<8x16xf32>
    %57 = arith.index_cast %37 : i32 to index
    %c0_23 = arith.constant 0 : index
    %58 = vector.load %arg9[%57, %c0_23] : memref<64x16xf32, #tpu.memory_space<vmem>>, vector<8x16xf32>
    tpu.vector_store %arg9[%57, %c0_23], %56 {strides = array<i32>} : memref<64x16xf32, #tpu.memory_space<vmem>>, vector<8x16xf32>,
    %c2_i32 = arith.constant 2 : i32
    %c8_i32_24 = arith.constant 8 : i32
    %59 = arith.muli %c2_i32, %c8_i32_24 : i32
    %60 = tpu.assume_multiple %59, 8 : i32
    %61 = arith.index_cast %60 : i32 to index
    %c0_25 = arith.constant 0 : index
    %62 = vector.load %arg8[%61, %c0_25] : memref<64x64xf32, #tpu.memory_space<vmem>>, vector<8x64xf32>
    %cst_26 = arith.constant dense<0.000000e+00> : vector<8x64xf32>
    %63 = tpu.matmul %56, %10, %cst_26 {dimension_numbers = #tpu.dot_dimension_numbers<[1], [0], [0], [1], [0, 0, 1, 1], [], []>} : vector<8x16xf32>, vector<16x64xf32>, vector<8x64xf32> -> vector<8x64xf32>
    %64 = arith.addf %62, %63 : vector<8x64xf32>
    %65 = arith.negf %64 : vector<8x64xf32>
    %66 = math.exp %65 : vector<8x64xf32>
    %cst_27 = arith.constant 1.000000e+00 : f32
    %67 = vector.broadcast %cst_27 : f32 to vector<8x64xf32>
    %68 = arith.addf %67, %66 : vector<8x64xf32>
    %69 = arith.divf %67, %68 : vector<8x64xf32>
    %70 = math.tanh %64 : vector<8x64xf32>
    %71 = vector.extract_strided_slice %69 {offsets = [0, 0], sizes = [8, 16], strides = [1, 1]} : vector<8x64xf32> to vector<8x16xf32>
    %72 = vector.extract_strided_slice %69 {offsets = [0, 16], sizes = [8, 16], strides = [1, 1]} : vector<8x64xf32> to vector<8x16xf32>
    %73 = vector.extract_strided_slice %70 {offsets = [0, 32], sizes = [8, 16], strides = [1, 1]} : vector<8x64xf32> to vector<8x16xf32>
    %74 = vector.extract_strided_slice %69 {offsets = [0, 48], sizes = [8, 16], strides = [1, 1]} : vector<8x64xf32> to vector<8x16xf32>
    %75 = arith.mulf %72, %54 : vector<8x16xf32>
    %76 = arith.mulf %71, %73 : vector<8x16xf32>
    %77 = arith.addf %75, %76 : vector<8x16xf32>
    %78 = math.tanh %77 : vector<8x16xf32>
    %79 = arith.mulf %74, %78 : vector<8x16xf32>
    %80 = arith.index_cast %60 : i32 to index
    %c0_28 = arith.constant 0 : index
    %81 = vector.load %arg9[%80, %c0_28] : memref<64x16xf32, #tpu.memory_space<vmem>>, vector<8x16xf32>
    tpu.vector_store %arg9[%80, %c0_28], %79 {strides = array<i32>} : memref<64x16xf32, #tpu.memory_space<vmem>>, vector<8x16xf32>,
    %c3_i32 = arith.constant 3 : i32
    %c8_i32_29 = arith.constant 8 : i32
    %82 = arith.muli %c3_i32, %c8_i32_29 : i32
    %83 = tpu.assume_multiple %82, 8 : i32
    %84 = arith.index_cast %83 : i32 to index
    %c0_30 = arith.constant 0 : index
    %85 = vector.load %arg8[%84, %c0_30] : memref<64x64xf32, #tpu.memory_space<vmem>>, vector<8x64xf32>
    %cst_31 = arith.constant dense<0.000000e+00> : vector<8x64xf32>
    %86 = tpu.matmul %79, %10, %cst_31 {dimension_numbers = #tpu.dot_dimension_numbers<[1], [0], [0], [1], [0, 0, 1, 1], [], []>} : vector<8x16xf32>, vector<16x64xf32>, vector<8x64xf32> -> vector<8x64xf32>
    %87 = arith.addf %85, %86 : vector<8x64xf32>
    %88 = arith.negf %87 : vector<8x64xf32>
    %89 = math.exp %88 : vector<8x64xf32>
    %cst_32 = arith.constant 1.000000e+00 : f32
    %90 = vector.broadcast %cst_32 : f32 to vector<8x64xf32>
    %91 = arith.addf %90, %89 : vector<8x64xf32>
    %92 = arith.divf %90, %91 : vector<8x64xf32>
    %93 = math.tanh %87 : vector<8x64xf32>
    %94 = vector.extract_strided_slice %92 {offsets = [0, 0], sizes = [8, 16], strides = [1, 1]} : vector<8x64xf32> to vector<8x16xf32>
    %95 = vector.extract_strided_slice %92 {offsets = [0, 16], sizes = [8, 16], strides = [1, 1]} : vector<8x64xf32> to vector<8x16xf32>
    %96 = vector.extract_strided_slice %93 {offsets = [0, 32], sizes = [8, 16], strides = [1, 1]} : vector<8x64xf32> to vector<8x16xf32>
    %97 = vector.extract_strided_slice %92 {offsets = [0, 48], sizes = [8, 16], strides = [1, 1]} : vector<8x64xf32> to vector<8x16xf32>
    %98 = arith.mulf %95, %77 : vector<8x16xf32>
    %99 = arith.mulf %94, %96 : vector<8x16xf32>
    %100 = arith.addf %98, %99 : vector<8x16xf32>
    %101 = math.tanh %100 : vector<8x16xf32>
    %102 = arith.mulf %97, %101 : vector<8x16xf32>
    %103 = arith.index_cast %83 : i32 to index
    %c0_33 = arith.constant 0 : index
    %104 = vector.load %arg9[%103, %c0_33] : memref<64x16xf32, #tpu.memory_space<vmem>>, vector<8x16xf32>
    tpu.vector_store %arg9[%103, %c0_33], %102 {strides = array<i32>} : memref<64x16xf32, #tpu.memory_space<vmem>>, vector<8x16xf32>,
    %c4_i32 = arith.constant 4 : i32
    %c8_i32_34 = arith.constant 8 : i32
    %105 = arith.muli %c4_i32, %c8_i32_34 : i32
    %106 = tpu.assume_multiple %105, 8 : i32
    %107 = arith.index_cast %106 : i32 to index
    %c0_35 = arith.constant 0 : index
    %108 = vector.load %arg8[%107, %c0_35] : memref<64x64xf32, #tpu.memory_space<vmem>>, vector<8x64xf32>
    %cst_36 = arith.constant dense<0.000000e+00> : vector<8x64xf32>
    %109 = tpu.matmul %102, %10, %cst_36 {dimension_numbers = #tpu.dot_dimension_numbers<[1], [0], [0], [1], [0, 0, 1, 1], [], []>} : vector<8x16xf32>, vector<16x64xf32>, vector<8x64xf32> -> vector<8x64xf32>
    %110 = arith.addf %108, %109 : vector<8x64xf32>
    %111 = arith.negf %110 : vector<8x64xf32>
    %112 = math.exp %111 : vector<8x64xf32>
    %cst_37 = arith.constant 1.000000e+00 : f32
    %113 = vector.broadcast %cst_37 : f32 to vector<8x64xf32>
    %114 = arith.addf %113, %112 : vector<8x64xf32>
    %115 = arith.divf %113, %114 : vector<8x64xf32>
    %116 = math.tanh %110 : vector<8x64xf32>
    %117 = vector.extract_strided_slice %115 {offsets = [0, 0], sizes = [8, 16], strides = [1, 1]} : vector<8x64xf32> to vector<8x16xf32>
    %118 = vector.extract_strided_slice %115 {offsets = [0, 16], sizes = [8, 16], strides = [1, 1]} : vector<8x64xf32> to vector<8x16xf32>
    %119 = vector.extract_strided_slice %116 {offsets = [0, 32], sizes = [8, 16], strides = [1, 1]} : vector<8x64xf32> to vector<8x16xf32>
    %120 = vector.extract_strided_slice %115 {offsets = [0, 48], sizes = [8, 16], strides = [1, 1]} : vector<8x64xf32> to vector<8x16xf32>
    %121 = arith.mulf %118, %100 : vector<8x16xf32>
    %122 = arith.mulf %117, %119 : vector<8x16xf32>
    %123 = arith.addf %121, %122 : vector<8x16xf32>
    %124 = math.tanh %123 : vector<8x16xf32>
    %125 = arith.mulf %120, %124 : vector<8x16xf32>
    %126 = arith.index_cast %106 : i32 to index
    %c0_38 = arith.constant 0 : index
    %127 = vector.load %arg9[%126, %c0_38] : memref<64x16xf32, #tpu.memory_space<vmem>>, vector<8x16xf32>
    tpu.vector_store %arg9[%126, %c0_38], %125 {strides = array<i32>} : memref<64x16xf32, #tpu.memory_space<vmem>>, vector<8x16xf32>,
    %c5_i32 = arith.constant 5 : i32
    %c8_i32_39 = arith.constant 8 : i32
    %128 = arith.muli %c5_i32, %c8_i32_39 : i32
    %129 = tpu.assume_multiple %128, 8 : i32
    %130 = arith.index_cast %129 : i32 to index
    %c0_40 = arith.constant 0 : index
    %131 = vector.load %arg8[%130, %c0_40] : memref<64x64xf32, #tpu.memory_space<vmem>>, vector<8x64xf32>
    %cst_41 = arith.constant dense<0.000000e+00> : vector<8x64xf32>
    %132 = tpu.matmul %125, %10, %cst_41 {dimension_numbers = #tpu.dot_dimension_numbers<[1], [0], [0], [1], [0, 0, 1, 1], [], []>} : vector<8x16xf32>, vector<16x64xf32>, vector<8x64xf32> -> vector<8x64xf32>
    %133 = arith.addf %131, %132 : vector<8x64xf32>
    %134 = arith.negf %133 : vector<8x64xf32>
    %135 = math.exp %134 : vector<8x64xf32>
    %cst_42 = arith.constant 1.000000e+00 : f32
    %136 = vector.broadcast %cst_42 : f32 to vector<8x64xf32>
    %137 = arith.addf %136, %135 : vector<8x64xf32>
    %138 = arith.divf %136, %137 : vector<8x64xf32>
    %139 = math.tanh %133 : vector<8x64xf32>
    %140 = vector.extract_strided_slice %138 {offsets = [0, 0], sizes = [8, 16], strides = [1, 1]} : vector<8x64xf32> to vector<8x16xf32>
    %141 = vector.extract_strided_slice %138 {offsets = [0, 16], sizes = [8, 16], strides = [1, 1]} : vector<8x64xf32> to vector<8x16xf32>
    %142 = vector.extract_strided_slice %139 {offsets = [0, 32], sizes = [8, 16], strides = [1, 1]} : vector<8x64xf32> to vector<8x16xf32>
    %143 = vector.extract_strided_slice %138 {offsets = [0, 48], sizes = [8, 16], strides = [1, 1]} : vector<8x64xf32> to vector<8x16xf32>
    %144 = arith.mulf %141, %123 : vector<8x16xf32>
    %145 = arith.mulf %140, %142 : vector<8x16xf32>
    %146 = arith.addf %144, %145 : vector<8x16xf32>
    %147 = math.tanh %146 : vector<8x16xf32>
    %148 = arith.mulf %143, %147 : vector<8x16xf32>
    %149 = arith.index_cast %129 : i32 to index
    %c0_43 = arith.constant 0 : index
    %150 = vector.load %arg9[%149, %c0_43] : memref<64x16xf32, #tpu.memory_space<vmem>>, vector<8x16xf32>
    tpu.vector_store %arg9[%149, %c0_43], %148 {strides = array<i32>} : memref<64x16xf32, #tpu.memory_space<vmem>>, vector<8x16xf32>,
    %c6_i32 = arith.constant 6 : i32
    %c8_i32_44 = arith.constant 8 : i32
    %151 = arith.muli %c6_i32, %c8_i32_44 : i32
    %152 = tpu.assume_multiple %151, 8 : i32
    %153 = arith.index_cast %152 : i32 to index
    %c0_45 = arith.constant 0 : index
    %154 = vector.load %arg8[%153, %c0_45] : memref<64x64xf32, #tpu.memory_space<vmem>>, vector<8x64xf32>
    %cst_46 = arith.constant dense<0.000000e+00> : vector<8x64xf32>
    %155 = tpu.matmul %148, %10, %cst_46 {dimension_numbers = #tpu.dot_dimension_numbers<[1], [0], [0], [1], [0, 0, 1, 1], [], []>} : vector<8x16xf32>, vector<16x64xf32>, vector<8x64xf32> -> vector<8x64xf32>
    %156 = arith.addf %154, %155 : vector<8x64xf32>
    %157 = arith.negf %156 : vector<8x64xf32>
    %158 = math.exp %157 : vector<8x64xf32>
    %cst_47 = arith.constant 1.000000e+00 : f32
    %159 = vector.broadcast %cst_47 : f32 to vector<8x64xf32>
    %160 = arith.addf %159, %158 : vector<8x64xf32>
    %161 = arith.divf %159, %160 : vector<8x64xf32>
    %162 = math.tanh %156 : vector<8x64xf32>
    %163 = vector.extract_strided_slice %161 {offsets = [0, 0], sizes = [8, 16], strides = [1, 1]} : vector<8x64xf32> to vector<8x16xf32>
    %164 = vector.extract_strided_slice %161 {offsets = [0, 16], sizes = [8, 16], strides = [1, 1]} : vector<8x64xf32> to vector<8x16xf32>
    %165 = vector.extract_strided_slice %162 {offsets = [0, 32], sizes = [8, 16], strides = [1, 1]} : vector<8x64xf32> to vector<8x16xf32>
    %166 = vector.extract_strided_slice %161 {offsets = [0, 48], sizes = [8, 16], strides = [1, 1]} : vector<8x64xf32> to vector<8x16xf32>
    %167 = arith.mulf %164, %146 : vector<8x16xf32>
    %168 = arith.mulf %163, %165 : vector<8x16xf32>
    %169 = arith.addf %167, %168 : vector<8x16xf32>
    %170 = math.tanh %169 : vector<8x16xf32>
    %171 = arith.mulf %166, %170 : vector<8x16xf32>
    %172 = arith.index_cast %152 : i32 to index
    %c0_48 = arith.constant 0 : index
    %173 = vector.load %arg9[%172, %c0_48] : memref<64x16xf32, #tpu.memory_space<vmem>>, vector<8x16xf32>
    tpu.vector_store %arg9[%172, %c0_48], %171 {strides = array<i32>} : memref<64x16xf32, #tpu.memory_space<vmem>>, vector<8x16xf32>,
    %c7_i32 = arith.constant 7 : i32
    %c8_i32_49 = arith.constant 8 : i32
    %174 = arith.muli %c7_i32, %c8_i32_49 : i32
    %175 = tpu.assume_multiple %174, 8 : i32
    %176 = arith.index_cast %175 : i32 to index
    %c0_50 = arith.constant 0 : index
    %177 = vector.load %arg8[%176, %c0_50] : memref<64x64xf32, #tpu.memory_space<vmem>>, vector<8x64xf32>
    %cst_51 = arith.constant dense<0.000000e+00> : vector<8x64xf32>
    %178 = tpu.matmul %171, %10, %cst_51 {dimension_numbers = #tpu.dot_dimension_numbers<[1], [0], [0], [1], [0, 0, 1, 1], [], []>} : vector<8x16xf32>, vector<16x64xf32>, vector<8x64xf32> -> vector<8x64xf32>
    %179 = arith.addf %177, %178 : vector<8x64xf32>
    %180 = arith.negf %179 : vector<8x64xf32>
    %181 = math.exp %180 : vector<8x64xf32>
    %cst_52 = arith.constant 1.000000e+00 : f32
    %182 = vector.broadcast %cst_52 : f32 to vector<8x64xf32>
    %183 = arith.addf %182, %181 : vector<8x64xf32>
    %184 = arith.divf %182, %183 : vector<8x64xf32>
    %185 = math.tanh %179 : vector<8x64xf32>
    %186 = vector.extract_strided_slice %184 {offsets = [0, 0], sizes = [8, 16], strides = [1, 1]} : vector<8x64xf32> to vector<8x16xf32>
    %187 = vector.extract_strided_slice %184 {offsets = [0, 16], sizes = [8, 16], strides = [1, 1]} : vector<8x64xf32> to vector<8x16xf32>
    %188 = vector.extract_strided_slice %185 {offsets = [0, 32], sizes = [8, 16], strides = [1, 1]} : vector<8x64xf32> to vector<8x16xf32>
    %189 = vector.extract_strided_slice %184 {offsets = [0, 48], sizes = [8, 16], strides = [1, 1]} : vector<8x64xf32> to vector<8x16xf32>
    %190 = arith.mulf %187, %169 : vector<8x16xf32>
    %191 = arith.mulf %186, %188 : vector<8x16xf32>
    %192 = arith.addf %190, %191 : vector<8x16xf32>
    %193 = math.tanh %192 : vector<8x16xf32>
    %194 = arith.mulf %189, %193 : vector<8x16xf32>
    %195 = arith.index_cast %175 : i32 to index
    %c0_53 = arith.constant 0 : index
    %196 = vector.load %arg9[%195, %c0_53] : memref<64x16xf32, #tpu.memory_space<vmem>>, vector<8x16xf32>
    tpu.vector_store %arg9[%195, %c0_53], %194 {strides = array<i32>} : memref<64x16xf32, #tpu.memory_space<vmem>>, vector<8x16xf32>,
    %c8_i32_54 = arith.constant 8 : i32
    %c0_55 = arith.constant 0 : index
    %c0_56 = arith.constant 0 : index
    %197 = vector.load %arg10[%c0_55, %c0_56] : memref<8x16xf32, #tpu.memory_space<vmem>>, vector<8x16xf32>
    tpu.vector_store %arg10[%c0_55, %c0_56], %194 {strides = array<i32>} : memref<8x16xf32, #tpu.memory_space<vmem>>, vector<8x16xf32>,
    %c0_57 = arith.constant 0 : index
    %c0_58 = arith.constant 0 : index
    %198 = vector.load %arg11[%c0_57, %c0_58] : memref<8x16xf32, #tpu.memory_space<vmem>>, vector<8x16xf32>
    tpu.vector_store %arg11[%c0_57, %c0_58], %192 {strides = array<i32>} : memref<8x16xf32, #tpu.memory_space<vmem>>, vector<8x16xf32>,
    %c0_59 = arith.constant 0 : index
    %c0_60 = arith.constant 0 : index
    %199 = vector.load %arg5[%c0_59, %c0_60] : memref<1x16xf32, #tpu.memory_space<vmem>>, vector<1x16xf32>
    %c0_61 = arith.constant 0 : index
    %c0_62 = arith.constant 0 : index
    %200 = vector.load %arg9[%c0_61, %c0_62] : memref<64x16xf32, #tpu.memory_space<vmem>>, vector<64x16xf32>
    %cst_63 = arith.constant dense<0.000000e+00> : vector<1x64xf32>
    %201 = tpu.matmul %199, %200, %cst_63 {dimension_numbers = #tpu.dot_dimension_numbers<[1], [1], [0], [0], [0, 0, 1, 0], [], []>} : vector<1x16xf32>, vector<64x16xf32>, vector<1x64xf32> -> vector<1x64xf32>
    %c0_64 = arith.constant 0 : index
    %c0_65 = arith.constant 0 : index
    %202 = vector.load %arg6[%c0_64, %c0_65] : memref<1x1xf32, #tpu.memory_space<vmem>>, vector<1x1xf32>
    %203 = vector.broadcast %202 : vector<1x1xf32> to vector<1x64xf32>
    %204 = arith.addf %201, %203 : vector<1x64xf32>
    %c0_66 = arith.constant 0 : index
    %c0_67 = arith.constant 0 : index
    %205 = vector.load %arg7[%c0_66, %c0_67] : memref<1x64xf32, #tpu.memory_space<vmem>>, vector<1x64xf32>
    tpu.vector_store %arg7[%c0_66, %c0_67], %204 {strides = array<i32>} : memref<1x64xf32, #tpu.memory_space<vmem>>, vector<1x64xf32>,
    return
  }
  func.func @transform_0(%arg0: i32) -> (i32, i32) {
    %c0_i32 = arith.constant 0 : i32
    %c0_i32_0 = arith.constant 0 : i32
    return %arg0, %c0_i32 : i32, i32
  }
  func.func @transform_1(%arg0: i32) -> (i32, i32) {
    %c0_i32 = arith.constant 0 : i32
    %c0_i32_0 = arith.constant 0 : i32
    %c0_i32_1 = arith.constant 0 : i32
    return %c0_i32, %c0_i32_0 : i32, i32
  }
  func.func @transform_2(%arg0: i32) -> (i32, i32) {
    %c0_i32 = arith.constant 0 : i32
    %c0_i32_0 = arith.constant 0 : i32
    %c0_i32_1 = arith.constant 0 : i32
    return %c0_i32, %c0_i32_0 : i32, i32
  }
  func.func @transform_3(%arg0: i32) -> (i32, i32) {
    %c0_i32 = arith.constant 0 : i32
    %c0_i32_0 = arith.constant 0 : i32
    %c0_i32_1 = arith.constant 0 : i32
    return %c0_i32, %c0_i32_0 : i32, i32
  }
  func.func @transform_4(%arg0: i32) -> (i32, i32) {
    %c0_i32 = arith.constant 0 : i32
    %c0_i32_0 = arith.constant 0 : i32
    %c0_i32_1 = arith.constant 0 : i32
    return %c0_i32, %c0_i32_0 : i32, i32
  }
  func.func @transform_5(%arg0: i32) -> (i32, i32) {
    %c0_i32 = arith.constant 0 : i32
    %c0_i32_0 = arith.constant 0 : i32
    %c0_i32_1 = arith.constant 0 : i32
    return %c0_i32, %c0_i32_0 : i32, i32
  }
  func.func @transform_6(%arg0: i32) -> (i32, i32) {
    %c0_i32 = arith.constant 0 : i32
    %c0_i32_0 = arith.constant 0 : i32
    return %c0_i32, %arg0 : i32, i32
  }
}

</mosaic_0001>

<llo_original>
// kernel: tpu_custom_call.1
$region0: #{tpu_custom_call.1}
  #allocation0 [shape = 'u32[]', space=smem, size = 0x4, offset = 0x4, fixed_abs, tag = 'smem constant byte address 0x4 - core index']
  #allocation1 [shape = 'u32[144,128]{1,0:T(1,128)}', space=vmem, size = 0x12000, scoped, tag = 'internal scratch']
  #allocation2 [shape = 'f32[64,64]{1,0:T(8,128)}', space=vmem, size = 0x8000, scoped, tag = 'scratch operand']
  #allocation3 [shape = 'f32[64,16]{1,0:T(8,128)}', space=vmem, size = 0x8000, scoped, tag = 'scratch operand']
  #allocation4 [shape = 'f32[8,16]{1,0:T(8,128)}', space=vmem, size = 0x1000, scoped, tag = 'scratch operand']
  #allocation5 [shape = 'f32[8,16]{1,0:T(8,128)}', space=vmem, size = 0x1000, scoped, tag = 'scratch operand']
  #allocation6 [shape = 'f32[1,1]{1,0:T(1,128)S(1)}', space=vmem, size = 0x200, scoped, tag = 'scoped memory for tpu_custom_call.1']
  %s0 = inlined_call_operand.vmem [shape: f32[64,2], index: 0, kind: input, shape index: {}]
  %s1 = inlined_call_operand.vmem [shape: f32[2,64], index: 1, kind: input, shape index: {}]
  %s2 = inlined_call_operand.vmem [shape: f32[16,64], index: 2, kind: input, shape index: {}]
  %s3 = inlined_call_operand.vmem [shape: f32[1,64], index: 3, kind: input, shape index: {}]
  %s4 = inlined_call_operand.vmem [shape: f32[1,16], index: 4, kind: input, shape index: {}]
  %s5 = inlined_call_operand.<no memory space> [shape: f32[1,1], index: 5, kind: input, shape index: {}]
  %s6 = inlined_call_operand.hbm [shape: f32[1,64], index: 6, kind: output, shape index: {}]
  %s7 = sld [smem:[#allocation0]]
  $region38: #{tpu_custom_call.1} parent=0
    _
  %s9 = ssub.s32 1, %s7
  %s10 = scalar_select 0, %s9, %s7
  %v11 = vstv %s5
  %12 = vst [vmem:[#allocation6] sm:$0x1] %v11
  $region1: #{tpu_custom_call.1} parent=0
    #allocation7 [shape = 'u8[512]{0}', space=vmem, size = 0x400, scoped, tag = 'output window, operand 0, single buffered']
    #allocation8 [shape = 's32[1]{0}', space=sflag, size = 0x4, scoped, tag = 'scoped memory for tpu_custom_call.1']
    %13 = vsyncpa [#allocation8], 0
    // Predicated region
    $region2: #{tpu_custom_call.1} parent=1 // pred_check
      _
    $region3: #{tpu_custom_call.1} parent=1 // pred_check_branch
      %15 = sbr.rel (0) target = $region5
    $region4: #{tpu_custom_call.1} parent=1 // pred_region
      _
    $region5: #{tpu_custom_call.1} parent=1 // pred_fallthru
      _
    // Predicated region
    $region6: #{tpu_custom_call.1} parent=1 // pred_check
      _
    $region7: #{tpu_custom_call.1} parent=1 // pred_check_branch
      %17 = sbr.rel (0) target = $region9
    $region8: #{tpu_custom_call.1} parent=1 // pred_region
      _
    $region9: #{tpu_custom_call.1} parent=1 // pred_fallthru
      _
    // Predicated region
    $region10: #{tpu_custom_call.1} parent=1 // pred_check
      _
    $region11: #{tpu_custom_call.1} parent=1 // pred_check_branch
      %19 = sbr.rel (0) target = $region13
    $region12: #{tpu_custom_call.1} parent=1 // pred_region
      _
    $region13: #{tpu_custom_call.1} parent=1 // pred_fallthru
      _
    // Predicated region
    $region14: #{tpu_custom_call.1} parent=1 // pred_check
      _
    $region15: #{tpu_custom_call.1} parent=1 // pred_check_branch
      %21 = sbr.rel (0) target = $region17
    $region16: #{tpu_custom_call.1} parent=1 // pred_region
      _
    $region17: #{tpu_custom_call.1} parent=1 // pred_fallthru
      _
    // Predicated region
    $region18: #{tpu_custom_call.1} parent=1 // pred_check
      _
    $region19: #{tpu_custom_call.1} parent=1 // pred_check_branch
      %23 = sbr.rel (0) target = $region21
    $region20: #{tpu_custom_call.1} parent=1 // pred_region
      _
    $region21: #{tpu_custom_call.1} parent=1 // pred_fallthru
      _
    // Predicated region
    $region22: #{tpu_custom_call.1} parent=1 // pred_check
      _
    $region23: #{tpu_custom_call.1} parent=1 // pred_check_branch
      %25 = sbr.rel (0) target = $region25
    $region24: #{tpu_custom_call.1} parent=1 // pred_region
      _
    $region25: #{tpu_custom_call.1} parent=1 // pred_fallthru
      _
    %p26 = scmp.eq.s32.totalorder 0, 0
    // Predicated region
    $region26: #{tpu_custom_call.1} parent=1 // pred_check
      %p27 = pneg %p26
    $region27: #{tpu_custom_call.1} parent=1 // pred_check_branch
      %29 = sbr.rel (%p27) target = $region29
    $region28: #{tpu_custom_call.1} parent=1 // pred_region
      %vm30 = vcmask 130048
      %31 = vst.msk [vmem:[#allocation4] sm:$0xff] %vm30, 0.0
      %32 = vst.msk [vmem:[#allocation5] sm:$0xff] %vm30, 0.0
    $region29: #{tpu_custom_call.1} parent=1 // pred_fallthru
      _
    %v33 = vld [vmem:[%s0] sm:$0xff]
    %v34 = vld [vmem:[%s0 + $0x8] sm:$0xff]
    %v35 = vld [vmem:[%s0 + $0x10] sm:$0xff]
    %v36 = vld [vmem:[%s0 + $0x18] sm:$0xff]
    %v37 = vld [vmem:[%s0 + $0x20] sm:$0xff]
    %v38 = vld [vmem:[%s0 + $0x28] sm:$0xff]
    %v39 = vld [vmem:[%s0 + $0x30] sm:$0xff]
    %v40 = vld [vmem:[%s0 + $0x38] sm:$0xff]
    %v41 = vld [vmem:[%s1] sm:$0x3]
    %v42 = vld [vmem:[%s3] sm:$0x1]
    %v44 = vlaneseq
    %v45 = vshrl.u32 %v44, 7
    %v46 = vsub.s32 0, %v45
    %v47 = vrot.slane %v42, %v46
    %vm49 = vcmask 15360
    %v51 = vsel %vm49, %v33, 0
    %v54 = vsel %vm49, %v34, 0
    %v57 = vsel %vm49, %v35, 0
    %v60 = vsel %vm49, %v36, 0
    %v63 = vsel %vm49, %v37, 0
    %v66 = vsel %vm49, %v38, 0
    %v69 = vsel %vm49, %v39, 0
    %v72 = vsel %vm49, %v40, 0
    %vm74 = vcmask 1041408
    %v76 = vsel %vm74, %v41, 0
    %78 = vmatprep.subr.mxu0 0.0
    %79 = vmatpush1.msra.mxu0 %v76
    %80 = vmatprep.subr.mxu0 0.0
    %81 = vmatpush1.msra.mxu0 0.0
    %82 = vmatprep.subr.mxu0 0.0
    %83 = vmatpush1.msra.mxu0 0.0
    %84 = vmatprep.subr.mxu0 0.0
    %85 = vmatpush1.msra.mxu0 0.0
    %86 = vmatprep.subr.mxu0 0.0
    %87 = vmatpush1.msra.mxu0 0.0
    %88 = vmatprep.subr.mxu0 0.0
    %89 = vmatpush1.msra.mxu0 0.0
    %90 = vmatprep.subr.mxu0 0.0
    %91 = vmatpush1.msra.mxu0 0.0
    %92 = vmatprep.subr.mxu0 0.0
    %93 = vmatpush1.msra.mxu0 0.0
    %94 = vmatprep.subr.mxu0 0.0
    %95 = vmatpush1.msra.mxu0 0.0
    %96 = vmatprep.subr.mxu0 0.0
    %97 = vmatpush1.msra.mxu0 0.0
    %98 = vmatprep.subr.mxu0 0.0
    %99 = vmatpush1.msra.mxu0 0.0
    %100 = vmatprep.subr.mxu0 0.0
    %101 = vmatpush1.msra.mxu0 0.0
    %102 = vmatprep.subr.mxu0 0.0
    %103 = vmatpush1.msra.mxu0 0.0
    %104 = vmatprep.subr.mxu0 0.0
    %105 = vmatpush1.msra.mxu0 0.0
    %106 = vmatprep.subr.mxu0 0.0
    %107 = vmatpush1.msra.mxu0 0.0
    %108 = vmatprep.subr.mxu0 0.0
    %109 = vmatpush1.msra.mxu0 0.0
    %110 = vmatprep.subr.mxu0 0.0
    %111 = vmatpush1.msra.mxu0 0.0
    %112 = vmatprep.subr.mxu0 0.0
    %113 = vmatpush1.msra.mxu0 0.0
    %114 = vmatprep.subr.mxu0 0.0
    %115 = vmatpush1.msra.mxu0 0.0
    %116 = vmatprep.subr.mxu0 0.0
    %117 = vmatpush1.msra.mxu0 0.0
    %118 = vmatprep.subr.mxu0 0.0
    %119 = vmatpush1.msra.mxu0 0.0
    %120 = vmatprep.subr.mxu0 0.0
    %121 = vmatpush1.msra.mxu0 0.0
    %122 = vmatprep.subr.mxu0 0.0
    %123 = vmatpush1.msra.mxu0 0.0
    %124 = vmatprep.subr.mxu0 0.0
    %125 = vmatpush1.msra.mxu0 0.0
    %126 = vmatprep.subr.mxu0 0.0
    %127 = vmatpush1.msra.mxu0 0.0
    %128 = vmatprep.subr.mxu0 0.0
    %129 = vmatpush1.msra.mxu0 0.0
    %130 = vmatprep.subr.mxu0 0.0
    %131 = vmatpush1.msra.mxu0 0.0
    %132 = vmatprep.subr.mxu0 0.0
    %133 = vmatpush1.msra.mxu0 0.0
    %134 = vmatprep.subr.mxu0 0.0
    %135 = vmatpush1.msra.mxu0 0.0
    %136 = vmatprep.subr.mxu0 0.0
    %137 = vmatpush1.msra.mxu0 0.0
    %138 = vmatprep.subr.mxu0 0.0
    %139 = vmatpush1.msra.mxu0 0.0
    %140 = vmatprep.subr.mxu0 0.0
    %141 = vmatpush1.msra.mxu0 0.0
    %142 = vmatprep.mubr.f32.mxu0 0.0
    %143 = vmatmul.mubr.f32.gmra.mrb[0].mxu0 %v51
    %v144 = vpop.f32.mrb[0].mxu0
    %v145 = vadd.f32 %v47, %v144
    %v146 = vpop.f32.mrb[0].mxu0
    %147 = vmatprep.mubr.f32.mxu0 0.0
    %148 = vmatmul.mubr.f32.gmra.mrb[0].mxu0 %v54
    %v149 = vpop.f32.mrb[0].mxu0
    %v150 = vadd.f32 %v47, %v149
    %v151 = vpop.f32.mrb[0].mxu0
    %152 = vmatprep.mubr.f32.mxu0 0.0
    %153 = vmatmul.mubr.f32.gmra.mrb[0].mxu0 %v57
    %v154 = vpop.f32.mrb[0].mxu0
    %v155 = vadd.f32 %v47, %v154
    %v156 = vpop.f32.mrb[0].mxu0
    %157 = vmatprep.mubr.f32.mxu0 0.0
    %158 = vmatmul.mubr.f32.gmra.mrb[0].mxu0 %v60
    %v159 = vpop.f32.mrb[0].mxu0
    %v160 = vadd.f32 %v47, %v159
    %v161 = vpop.f32.mrb[0].mxu0
    %162 = vmatprep.mubr.f32.mxu0 0.0
    %163 = vmatmul.mubr.f32.gmra.mrb[0].mxu0 %v63
    %v164 = vpop.f32.mrb[0].mxu0
    %v165 = vadd.f32 %v47, %v164
    %v166 = vpop.f32.mrb[0].mxu0
    %167 = vmatprep.mubr.f32.mxu0 0.0
    %168 = vmatmul.mubr.f32.gmra.mrb[0].mxu0 %v66
    %v169 = vpop.f32.mrb[0].mxu0
    %v170 = vadd.f32 %v47, %v169
    %v171 = vpop.f32.mrb[0].mxu0
    %172 = vmatprep.mubr.f32.mxu0 0.0
    %173 = vmatmul.mubr.f32.gmra.mrb[0].mxu0 %v69
    %v174 = vpop.f32.mrb[0].mxu0
    %v175 = vadd.f32 %v47, %v174
    %v176 = vpop.f32.mrb[0].mxu0
    %177 = vmatprep.mubr.f32.mxu0 0.0
    %178 = vmatmul.mubr.f32.gmra.mrb[0].mxu0 %v72
    %v179 = vpop.f32.mrb[0].mxu0
    %v180 = vadd.f32 %v47, %v179
    %v181 = vpop.f32.mrb[0].mxu0
    %182 = vdwg.mxu0
    %vm183 = vcmask 523264
    %184 = vst.msk [vmem:[#allocation2] sm:$0xff] %vm183, %v145
    %185 = vst.msk [vmem:[#allocation2 + $0x8] sm:$0xff] %vm183, %v150
    %186 = vst.msk [vmem:[#allocation2 + $0x10] sm:$0xff] %vm183, %v155
    %187 = vst.msk [vmem:[#allocation2 + $0x18] sm:$0xff] %vm183, %v160
    %188 = vst.msk [vmem:[#allocation2 + $0x20] sm:$0xff] %vm183, %v165
    %189 = vst.msk [vmem:[#allocation2 + $0x28] sm:$0xff] %vm183, %v170
    %190 = vst.msk [vmem:[#allocation2 + $0x30] sm:$0xff] %vm183, %v175
    %191 = vst.msk [vmem:[#allocation2 + $0x38] sm:$0xff] %vm183, %v180
    %v192 = vld [vmem:[%s2] sm:$0xff]
    %v193 = vld [vmem:[%s2 + $0x8] sm:$0xff]
    %v194 = vld [vmem:[#allocation4] sm:$0xff]
    %v195 = vld [vmem:[#allocation5] sm:$0xff]
    %v196 = vld [vmem:[#allocation2] sm:$0xff]
    %vm197 = vcmask 130048
    %v199 = vsel %vm197, %v194, 0
    %201 = vmatprep.subr.mxu0 0.0
    %202 = vmatpush1.msra.mxu0 %v192
    %203 = vmatprep.subr.mxu0 0.0
    %204 = vmatpush1.msra.mxu0 %v193
    %205 = vmatprep.subr.mxu0 0.0
    %206 = vmatpush1.msra.mxu0 0.0
    %207 = vmatprep.subr.mxu0 0.0
    %208 = vmatpush1.msra.mxu0 0.0
    %209 = vmatprep.subr.mxu0 0.0
    %210 = vmatpush1.msra.mxu0 0.0
    %211 = vmatprep.subr.mxu0 0.0
    %212 = vmatpush1.msra.mxu0 0.0
    %213 = vmatprep.subr.mxu0 0.0
    %214 = vmatpush1.msra.mxu0 0.0
    %215 = vmatprep.subr.mxu0 0.0
    %216 = vmatpush1.msra.mxu0 0.0
    %217 = vmatprep.subr.mxu0 0.0
    %218 = vmatpush1.msra.mxu0 0.0
    %219 = vmatprep.subr.mxu0 0.0
    %220 = vmatpush1.msra.mxu0 0.0
    %221 = vmatprep.subr.mxu0 0.0
    %222 = vmatpush1.msra.mxu0 0.0
    %223 = vmatprep.subr.mxu0 0.0
    %224 = vmatpush1.msra.mxu0 0.0
    %225 = vmatprep.subr.mxu0 0.0
    %226 = vmatpush1.msra.mxu0 0.0
    %227 = vmatprep.subr.mxu0 0.0
    %228 = vmatpush1.msra.mxu0 0.0
    %229 = vmatprep.subr.mxu0 0.0
    %230 = vmatpush1.msra.mxu0 0.0
    %231 = vmatprep.subr.mxu0 0.0
    %232 = vmatpush1.msra.mxu0 0.0
    %233 = vmatprep.subr.mxu0 0.0
    %234 = vmatpush1.msra.mxu0 0.0
    %235 = vmatprep.subr.mxu0 0.0
    %236 = vmatpush1.msra.mxu0 0.0
    %237 = vmatprep.subr.mxu0 0.0
    %238 = vmatpush1.msra.mxu0 0.0
    %239 = vmatprep.subr.mxu0 0.0
    %240 = vmatpush1.msra.mxu0 0.0
    %241 = vmatprep.subr.mxu0 0.0
    %242 = vmatpush1.msra.mxu0 0.0
    %243 = vmatprep.subr.mxu0 0.0
    %244 = vmatpush1.msra.mxu0 0.0
    %245 = vmatprep.subr.mxu0 0.0
    %246 = vmatpush1.msra.mxu0 0.0
    %247 = vmatprep.subr.mxu0 0.0
    %248 = vmatpush1.msra.mxu0 0.0
    %249 = vmatprep.subr.mxu0 0.0
    %250 = vmatpush1.msra.mxu0 0.0
    %251 = vmatprep.subr.mxu0 0.0
    %252 = vmatpush1.msra.mxu0 0.0
    %253 = vmatprep.subr.mxu0 0.0
    %254 = vmatpush1.msra.mxu0 0.0
    %255 = vmatprep.subr.mxu0 0.0
    %256 = vmatpush1.msra.mxu0 0.0
    %257 = vmatprep.subr.mxu0 0.0
    %258 = vmatpush1.msra.mxu0 0.0
    %259 = vmatprep.subr.mxu0 0.0
    %260 = vmatpush1.msra.mxu0 0.0
    %261 = vmatprep.subr.mxu0 0.0
    %262 = vmatpush1.msra.mxu0 0.0
    %263 = vmatprep.subr.mxu0 0.0
    %264 = vmatpush1.msra.mxu0 0.0
    %265 = vmatprep.mubr.f32.mxu0 0.0
    %266 = vmatmul.mubr.f32.gmra.mrb[0].mxu0 %v199
    %v267 = vpop.f32.mrb[0].mxu0
    %v268 = vadd.f32 0.0, %v267
    %v269 = vpop.f32.mrb[0].mxu0
    %270 = vdwg.mxu0
    %v271 = vadd.f32 %v196, %v268
    %v272 = vxor.u32 %v271, 2147483648
    %v273 = vmul.f32 %v272, 1.442695
    %v274 = vpow.pop %v273
    %v275 = vadd.f32 %v274, 1.0
    %v276 = vrcp.pop %v275
    %v277 = vmul.f32 1.0, %v276
    %v278 = vtanh.pop %v271
    %280 = vrot.lane.b32.xlu0 %v195, 16
    %v281 = vpop.permute.xlu0 %280
    %v283 = vmul.f32 %v277, %v281
    %285 = vrot.lane.b32.xlu0 %v278, 96
    %v286 = vpop.permute.xlu0 %285
    %v288 = vmul.f32 %v277, %v286
    %290 = vrot.lane.b32.xlu0 %v288, 16
    %v291 = vpop.permute.xlu0 %290
    %v293 = vadd.f32 %v283, %v291
    %v294 = vtanh.pop %v293
    %296 = vrot.lane.b32.xlu0 %v294, 32
    %v297 = vpop.permute.xlu0 %296
    %v299 = vmul.f32 %v277, %v297
    %301 = vrot.lane.b32.xlu0 %v299, 80
    %v302 = vpop.permute.xlu0 %301
    %304 = vst.msk [vmem:[#allocation3] sm:$0xff] %vm197, %v302
    %s305 = scalar_lea.vmem [#allocation2], 8
    %v306 = vld [vmem:[%s305] sm:$0xff]
    %v307 = vsel %vm197, %v302, 0
    %309 = vmatprep.subr.mxu0 0.0
    %310 = vmatpush1.msra.mxu0 %v192
    %311 = vmatprep.subr.mxu0 0.0
    %312 = vmatpush1.msra.mxu0 %v193
    %313 = vmatprep.subr.mxu0 0.0
    %314 = vmatpush1.msra.mxu0 0.0
    %315 = vmatprep.subr.mxu0 0.0
    %316 = vmatpush1.msra.mxu0 0.0
    %317 = vmatprep.subr.mxu0 0.0
    %318 = vmatpush1.msra.mxu0 0.0
    %319 = vmatprep.subr.mxu0 0.0
    %320 = vmatpush1.msra.mxu0 0.0
    %321 = vmatprep.subr.mxu0 0.0
    %322 = vmatpush1.msra.mxu0 0.0
    %323 = vmatprep.subr.mxu0 0.0
    %324 = vmatpush1.msra.mxu0 0.0
    %325 = vmatprep.subr.mxu0 0.0
    %326 = vmatpush1.msra.mxu0 0.0
    %327 = vmatprep.subr.mxu0 0.0
    %328 = vmatpush1.msra.mxu0 0.0
    %329 = vmatprep.subr.mxu0 0.0
    %330 = vmatpush1.msra.mxu0 0.0
    %331 = vmatprep.subr.mxu0 0.0
    %332 = vmatpush1.msra.mxu0 0.0
    %333 = vmatprep.subr.mxu0 0.0
    %334 = vmatpush1.msra.mxu0 0.0
    %335 = vmatprep.subr.mxu0 0.0
    %336 = vmatpush1.msra.mxu0 0.0
    %337 = vmatprep.subr.mxu0 0.0
    %338 = vmatpush1.msra.mxu0 0.0
    %339 = vmatprep.subr.mxu0 0.0
    %340 = vmatpush1.msra.mxu0 0.0
    %341 = vmatprep.subr.mxu0 0.0
    %342 = vmatpush1.msra.mxu0 0.0
    %343 = vmatprep.subr.mxu0 0.0
    %344 = vmatpush1.msra.mxu0 0.0
    %345 = vmatprep.subr.mxu0 0.0
    %346 = vmatpush1.msra.mxu0 0.0
    %347 = vmatprep.subr.mxu0 0.0
    %348 = vmatpush1.msra.mxu0 0.0
    %349 = vmatprep.subr.mxu0 0.0
    %350 = vmatpush1.msra.mxu0 0.0
    %351 = vmatprep.subr.mxu0 0.0
    %352 = vmatpush1.msra.mxu0 0.0
    %353 = vmatprep.subr.mxu0 0.0
    %354 = vmatpush1.msra.mxu0 0.0
    %355 = vmatprep.subr.mxu0 0.0
    %356 = vmatpush1.msra.mxu0 0.0
    %357 = vmatprep.subr.mxu0 0.0
    %358 = vmatpush1.msra.mxu0 0.0
    %359 = vmatprep.subr.mxu0 0.0
    %360 = vmatpush1.msra.mxu0 0.0
    %361 = vmatprep.subr.mxu0 0.0
    %362 = vmatpush1.msra.mxu0 0.0
    %363 = vmatprep.subr.mxu0 0.0
    %364 = vmatpush1.msra.mxu0 0.0
    %365 = vmatprep.subr.mxu0 0.0
    %366 = vmatpush1.msra.mxu0 0.0
    %367 = vmatprep.subr.mxu0 0.0
    %368 = vmatpush1.msra.mxu0 0.0
    %369 = vmatprep.subr.mxu0 0.0
    %370 = vmatpush1.msra.mxu0 0.0
    %371 = vmatprep.subr.mxu0 0.0
    %372 = vmatpush1.msra.mxu0 0.0
    %373 = vmatprep.mubr.f32.mxu0 0.0
    %374 = vmatmul.mubr.f32.gmra.mrb[0].mxu0 %v307
    %v375 = vpop.f32.mrb[0].mxu0
    %v376 = vadd.f32 0.0, %v375
    %v377 = vpop.f32.mrb[0].mxu0
    %378 = vdwg.mxu0
    %v379 = vadd.f32 %v306, %v376
    %v380 = vxor.u32 %v379, 2147483648
    %v381 = vmul.f32 %v380, 1.442695
    %v382 = vpow.pop %v381
    %v383 = vadd.f32 %v382, 1.0
    %v384 = vrcp.pop %v383
    %v385 = vmul.f32 1.0, %v384
    %v386 = vtanh.pop %v379
    %v387 = vmul.f32 %v385, %v293
    %389 = vrot.lane.b32.xlu0 %v386, 96
    %v390 = vpop.permute.xlu0 %389
    %v392 = vmul.f32 %v385, %v390
    %394 = vrot.lane.b32.xlu0 %v392, 16
    %v395 = vpop.permute.xlu0 %394
    %v397 = vadd.f32 %v387, %v395
    %v398 = vtanh.pop %v397
    %400 = vrot.lane.b32.xlu0 %v398, 32
    %v401 = vpop.permute.xlu0 %400
    %v403 = vmul.f32 %v385, %v401
    %405 = vrot.lane.b32.xlu0 %v403, 80
    %v406 = vpop.permute.xlu0 %405
    %s408 = scalar_lea.vmem [#allocation3], 8
    %409 = vst.msk [vmem:[%s408] sm:$0xff] %vm197, %v406
    %s410 = scalar_lea.vmem [#allocation2], 16
    %v411 = vld [vmem:[%s410] sm:$0xff]
    %v412 = vsel %vm197, %v406, 0
    %414 = vmatprep.subr.mxu0 0.0
    %415 = vmatpush1.msra.mxu0 %v192
    %416 = vmatprep.subr.mxu0 0.0
    %417 = vmatpush1.msra.mxu0 %v193
    %418 = vmatprep.subr.mxu0 0.0
    %419 = vmatpush1.msra.mxu0 0.0
    %420 = vmatprep.subr.mxu0 0.0
    %421 = vmatpush1.msra.mxu0 0.0
    %422 = vmatprep.subr.mxu0 0.0
    %423 = vmatpush1.msra.mxu0 0.0
    %424 = vmatprep.subr.mxu0 0.0
    %425 = vmatpush1.msra.mxu0 0.0
    %426 = vmatprep.subr.mxu0 0.0
    %427 = vmatpush1.msra.mxu0 0.0
    %428 = vmatprep.subr.mxu0 0.0
    %429 = vmatpush1.msra.mxu0 0.0
    %430 = vmatprep.subr.mxu0 0.0
    %431 = vmatpush1.msra.mxu0 0.0
    %432 = vmatprep.subr.mxu0 0.0
    %433 = vmatpush1.msra.mxu0 0.0
    %434 = vmatprep.subr.mxu0 0.0
    %435 = vmatpush1.msra.mxu0 0.0
    %436 = vmatprep.subr.mxu0 0.0
    %437 = vmatpush1.msra.mxu0 0.0
    %438 = vmatprep.subr.mxu0 0.0
    %439 = vmatpush1.msra.mxu0 0.0
    %440 = vmatprep.subr.mxu0 0.0
    %441 = vmatpush1.msra.mxu0 0.0
    %442 = vmatprep.subr.mxu0 0.0
    %443 = vmatpush1.msra.mxu0 0.0
    %444 = vmatprep.subr.mxu0 0.0
    %445 = vmatpush1.msra.mxu0 0.0
    %446 = vmatprep.subr.mxu0 0.0
    %447 = vmatpush1.msra.mxu0 0.0
    %448 = vmatprep.subr.mxu0 0.0
    %449 = vmatpush1.msra.mxu0 0.0
    %450 = vmatprep.subr.mxu0 0.0
    %451 = vmatpush1.msra.mxu0 0.0
    %452 = vmatprep.subr.mxu0 0.0
    %453 = vmatpush1.msra.mxu0 0.0
    %454 = vmatprep.subr.mxu0 0.0
    %455 = vmatpush1.msra.mxu0 0.0
    %456 = vmatprep.subr.mxu0 0.0
    %457 = vmatpush1.msra.mxu0 0.0
    %458 = vmatprep.subr.mxu0 0.0
    %459 = vmatpush1.msra.mxu0 0.0
    %460 = vmatprep.subr.mxu0 0.0
    %461 = vmatpush1.msra.mxu0 0.0
    %462 = vmatprep.subr.mxu0 0.0
    %463 = vmatpush1.msra.mxu0 0.0
    %464 = vmatprep.subr.mxu0 0.0
    %465 = vmatpush1.msra.mxu0 0.0
    %466 = vmatprep.subr.mxu0 0.0
    %467 = vmatpush1.msra.mxu0 0.0
    %468 = vmatprep.subr.mxu0 0.0
    %469 = vmatpush1.msra.mxu0 0.0
    %470 = vmatprep.subr.mxu0 0.0
    %471 = vmatpush1.msra.mxu0 0.0
    %472 = vmatprep.subr.mxu0 0.0
    %473 = vmatpush1.msra.mxu0 0.0
    %474 = vmatprep.subr.mxu0 0.0
    %475 = vmatpush1.msra.mxu0 0.0
    %476 = vmatprep.subr.mxu0 0.0
    %477 = vmatpush1.msra.mxu0 0.0
    %478 = vmatprep.mubr.f32.mxu0 0.0
    %479 = vmatmul.mubr.f32.gmra.mrb[0].mxu0 %v412
    %v480 = vpop.f32.mrb[0].mxu0
    %v481 = vadd.f32 0.0, %v480
    %v482 = vpop.f32.mrb[0].mxu0
    %483 = vdwg.mxu0
    %v484 = vadd.f32 %v411, %v481
    %v485 = vxor.u32 %v484, 2147483648
    %v486 = vmul.f32 %v485, 1.442695
    %v487 = vpow.pop %v486
    %v488 = vadd.f32 %v487, 1.0
    %v489 = vrcp.pop %v488
    %v490 = vmul.f32 1.0, %v489
    %v491 = vtanh.pop %v484
    %v492 = vmul.f32 %v490, %v397
    %494 = vrot.lane.b32.xlu0 %v491, 96
    %v495 = vpop.permute.xlu0 %494
    %v497 = vmul.f32 %v490, %v495
    %499 = vrot.lane.b32.xlu0 %v497, 16
    %v500 = vpop.permute.xlu0 %499
    %v502 = vadd.f32 %v492, %v500
    %v503 = vtanh.pop %v502
    %505 = vrot.lane.b32.xlu0 %v503, 32
    %v506 = vpop.permute.xlu0 %505
    %v508 = vmul.f32 %v490, %v506
    %510 = vrot.lane.b32.xlu0 %v508, 80
    %v511 = vpop.permute.xlu0 %510
    %s513 = scalar_lea.vmem [#allocation3], 16
    %514 = vst.msk [vmem:[%s513] sm:$0xff] %vm197, %v511
    %s515 = scalar_lea.vmem [#allocation2], 24
    %v516 = vld [vmem:[%s515] sm:$0xff]
    %v517 = vsel %vm197, %v511, 0
    %519 = vmatprep.subr.mxu0 0.0
    %520 = vmatpush1.msra.mxu0 %v192
    %521 = vmatprep.subr.mxu0 0.0
    %522 = vmatpush1.msra.mxu0 %v193
    %523 = vmatprep.subr.mxu0 0.0
    %524 = vmatpush1.msra.mxu0 0.0
    %525 = vmatprep.subr.mxu0 0.0
    %526 = vmatpush1.msra.mxu0 0.0
    %527 = vmatprep.subr.mxu0 0.0
    %528 = vmatpush1.msra.mxu0 0.0
    %529 = vmatprep.subr.mxu0 0.0
    %530 = vmatpush1.msra.mxu0 0.0
    %531 = vmatprep.subr.mxu0 0.0
    %532 = vmatpush1.msra.mxu0 0.0
    %533 = vmatprep.subr.mxu0 0.0
    %534 = vmatpush1.msra.mxu0 0.0
    %535 = vmatprep.subr.mxu0 0.0
    %536 = vmatpush1.msra.mxu0 0.0
    %537 = vmatprep.subr.mxu0 0.0
    %538 = vmatpush1.msra.mxu0 0.0
    %539 = vmatprep.subr.mxu0 0.0
    %540 = vmatpush1.msra.mxu0 0.0
    %541 = vmatprep.subr.mxu0 0.0
    %542 = vmatpush1.msra.mxu0 0.0
    %543 = vmatprep.subr.mxu0 0.0
    %544 = vmatpush1.msra.mxu0 0.0
    %545 = vmatprep.subr.mxu0 0.0
    %546 = vmatpush1.msra.mxu0 0.0
    %547 = vmatprep.subr.mxu0 0.0
    %548 = vmatpush1.msra.mxu0 0.0
    %549 = vmatprep.subr.mxu0 0.0
    %550 = vmatpush1.msra.mxu0 0.0
    %551 = vmatprep.subr.mxu0 0.0
    %552 = vmatpush1.msra.mxu0 0.0
    %553 = vmatprep.subr.mxu0 0.0
    %554 = vmatpush1.msra.mxu0 0.0
    %555 = vmatprep.subr.mxu0 0.0
    %556 = vmatpush1.msra.mxu0 0.0
    %557 = vmatprep.subr.mxu0 0.0
    %558 = vmatpush1.msra.mxu0 0.0
    %559 = vmatprep.subr.mxu0 0.0
    %560 = vmatpush1.msra.mxu0 0.0
    %561 = vmatprep.subr.mxu0 0.0
    %562 = vmatpush1.msra.mxu0 0.0
    %563 = vmatprep.subr.mxu0 0.0
    %564 = vmatpush1.msra.mxu0 0.0
    %565 = vmatprep.subr.mxu0 0.0
    %566 = vmatpush1.msra.mxu0 0.0
    %567 = vmatprep.subr.mxu0 0.0
    %568 = vmatpush1.msra.mxu0 0.0
    %569 = vmatprep.subr.mxu0 0.0
    %570 = vmatpush1.msra.mxu0 0.0
    %571 = vmatprep.subr.mxu0 0.0
    %572 = vmatpush1.msra.mxu0 0.0
    %573 = vmatprep.subr.mxu0 0.0
    %574 = vmatpush1.msra.mxu0 0.0
    %575 = vmatprep.subr.mxu0 0.0
    %576 = vmatpush1.msra.mxu0 0.0
    %577 = vmatprep.subr.mxu0 0.0
    %578 = vmatpush1.msra.mxu0 0.0
    %579 = vmatprep.subr.mxu0 0.0
    %580 = vmatpush1.msra.mxu0 0.0
    %581 = vmatprep.subr.mxu0 0.0
    %582 = vmatpush1.msra.mxu0 0.0
    %583 = vmatprep.mubr.f32.mxu0 0.0
    %584 = vmatmul.mubr.f32.gmra.mrb[0].mxu0 %v517
    %v585 = vpop.f32.mrb[0].mxu0
    %v586 = vadd.f32 0.0, %v585
    %v587 = vpop.f32.mrb[0].mxu0
    %588 = vdwg.mxu0
    %v589 = vadd.f32 %v516, %v586
    %v590 = vxor.u32 %v589, 2147483648
    %v591 = vmul.f32 %v590, 1.442695
    %v592 = vpow.pop %v591
    %v593 = vadd.f32 %v592, 1.0
    %v594 = vrcp.pop %v593
    %v595 = vmul.f32 1.0, %v594
    %v596 = vtanh.pop %v589
    %v597 = vmul.f32 %v595, %v502
    %599 = vrot.lane.b32.xlu0 %v596, 96
    %v600 = vpop.permute.xlu0 %599
    %v602 = vmul.f32 %v595, %v600
    %604 = vrot.lane.b32.xlu0 %v602, 16
    %v605 = vpop.permute.xlu0 %604
    %v607 = vadd.f32 %v597, %v605
    %v608 = vtanh.pop %v607
    %610 = vrot.lane.b32.xlu0 %v608, 32
    %v611 = vpop.permute.xlu0 %610
    %v613 = vmul.f32 %v595, %v611
    %615 = vrot.lane.b32.xlu0 %v613, 80
    %v616 = vpop.permute.xlu0 %615
    %s618 = scalar_lea.vmem [#allocation3], 24
    %619 = vst.msk [vmem:[%s618] sm:$0xff] %vm197, %v616
    %s620 = scalar_lea.vmem [#allocation2], 32
    %v621 = vld [vmem:[%s620] sm:$0xff]
    %v622 = vsel %vm197, %v616, 0
    %624 = vmatprep.subr.mxu0 0.0
    %625 = vmatpush1.msra.mxu0 %v192
    %626 = vmatprep.subr.mxu0 0.0
    %627 = vmatpush1.msra.mxu0 %v193
    %628 = vmatprep.subr.mxu0 0.0
    %629 = vmatpush1.msra.mxu0 0.0
    %630 = vmatprep.subr.mxu0 0.0
    %631 = vmatpush1.msra.mxu0 0.0
    %632 = vmatprep.subr.mxu0 0.0
    %633 = vmatpush1.msra.mxu0 0.0
    %634 = vmatprep.subr.mxu0 0.0
    %635 = vmatpush1.msra.mxu0 0.0
    %636 = vmatprep.subr.mxu0 0.0
    %637 = vmatpush1.msra.mxu0 0.0
    %638 = vmatprep.subr.mxu0 0.0
    %639 = vmatpush1.msra.mxu0 0.0
    %640 = vmatprep.subr.mxu0 0.0
    %641 = vmatpush1.msra.mxu0 0.0
    %642 = vmatprep.subr.mxu0 0.0
    %643 = vmatpush1.msra.mxu0 0.0
    %644 = vmatprep.subr.mxu0 0.0
    %645 = vmatpush1.msra.mxu0 0.0
    %646 = vmatprep.subr.mxu0 0.0
    %647 = vmatpush1.msra.mxu0 0.0
    %648 = vmatprep.subr.mxu0 0.0
    %649 = vmatpush1.msra.mxu0 0.0
    %650 = vmatprep.subr.mxu0 0.0
    %651 = vmatpush1.msra.mxu0 0.0
    %652 = vmatprep.subr.mxu0 0.0
    %653 = vmatpush1.msra.mxu0 0.0
    %654 = vmatprep.subr.mxu0 0.0
    %655 = vmatpush1.msra.mxu0 0.0
    %656 = vmatprep.subr.mxu0 0.0
    %657 = vmatpush1.msra.mxu0 0.0
    %658 = vmatprep.subr.mxu0 0.0
    %659 = vmatpush1.msra.mxu0 0.0
    %660 = vmatprep.subr.mxu0 0.0
    %661 = vmatpush1.msra.mxu0 0.0
    %662 = vmatprep.subr.mxu0 0.0
    %663 = vmatpush1.msra.mxu0 0.0
    %664 = vmatprep.subr.mxu0 0.0
    %665 = vmatpush1.msra.mxu0 0.0
    %666 = vmatprep.subr.mxu0 0.0
    %667 = vmatpush1.msra.mxu0 0.0
    %668 = vmatprep.subr.mxu0 0.0
    %669 = vmatpush1.msra.mxu0 0.0
    %670 = vmatprep.subr.mxu0 0.0
    %671 = vmatpush1.msra.mxu0 0.0
    %672 = vmatprep.subr.mxu0 0.0
    %673 = vmatpush1.msra.mxu0 0.0
    %674 = vmatprep.subr.mxu0 0.0
    %675 = vmatpush1.msra.mxu0 0.0
    %676 = vmatprep.subr.mxu0 0.0
    %677 = vmatpush1.msra.mxu0 0.0
    %678 = vmatprep.subr.mxu0 0.0
    %679 = vmatpush1.msra.mxu0 0.0
    %680 = vmatprep.subr.mxu0 0.0
    %681 = vmatpush1.msra.mxu0 0.0
    %682 = vmatprep.subr.mxu0 0.0
    %683 = vmatpush1.msra.mxu0 0.0
    %684 = vmatprep.subr.mxu0 0.0
    %685 = vmatpush1.msra.mxu0 0.0
    %686 = vmatprep.subr.mxu0 0.0
    %687 = vmatpush1.msra.mxu0 0.0
    %688 = vmatprep.mubr.f32.mxu0 0.0
    %689 = vmatmul.mubr.f32.gmra.mrb[0].mxu0 %v622
    %v690 = vpop.f32.mrb[0].mxu0
    %v691 = vadd.f32 0.0, %v690
    %v692 = vpop.f32.mrb[0].mxu0
    %693 = vdwg.mxu0
    %v694 = vadd.f32 %v621, %v691
    %v695 = vxor.u32 %v694, 2147483648
    %v696 = vmul.f32 %v695, 1.442695
    %v697 = vpow.pop %v696
    %v698 = vadd.f32 %v697, 1.0
    %v699 = vrcp.pop %v698
    %v700 = vmul.f32 1.0, %v699
    %v701 = vtanh.pop %v694
    %v702 = vmul.f32 %v700, %v607
    %704 = vrot.lane.b32.xlu0 %v701, 96
    %v705 = vpop.permute.xlu0 %704
    %v707 = vmul.f32 %v700, %v705
    %709 = vrot.lane.b32.xlu0 %v707, 16
    %v710 = vpop.permute.xlu0 %709
    %v712 = vadd.f32 %v702, %v710
    %v713 = vtanh.pop %v712
    %715 = vrot.lane.b32.xlu0 %v713, 32
    %v716 = vpop.permute.xlu0 %715
    %v718 = vmul.f32 %v700, %v716
    %720 = vrot.lane.b32.xlu0 %v718, 80
    %v721 = vpop.permute.xlu0 %720
    %s723 = scalar_lea.vmem [#allocation3], 32
    %724 = vst.msk [vmem:[%s723] sm:$0xff] %vm197, %v721
    %s725 = scalar_lea.vmem [#allocation2], 40
    %v726 = vld [vmem:[%s725] sm:$0xff]
    %v727 = vsel %vm197, %v721, 0
    %729 = vmatprep.subr.mxu0 0.0
    %730 = vmatpush1.msra.mxu0 %v192
    %731 = vmatprep.subr.mxu0 0.0
    %732 = vmatpush1.msra.mxu0 %v193
    %733 = vmatprep.subr.mxu0 0.0
    %734 = vmatpush1.msra.mxu0 0.0
    %735 = vmatprep.subr.mxu0 0.0
    %736 = vmatpush1.msra.mxu0 0.0
    %737 = vmatprep.subr.mxu0 0.0
    %738 = vmatpush1.msra.mxu0 0.0
    %739 = vmatprep.subr.mxu0 0.0
    %740 = vmatpush1.msra.mxu0 0.0
    %741 = vmatprep.subr.mxu0 0.0
    %742 = vmatpush1.msra.mxu0 0.0
    %743 = vmatprep.subr.mxu0 0.0
    %744 = vmatpush1.msra.mxu0 0.0
    %745 = vmatprep.subr.mxu0 0.0
    %746 = vmatpush1.msra.mxu0 0.0
    %747 = vmatprep.subr.mxu0 0.0
    %748 = vmatpush1.msra.mxu0 0.0
    %749 = vmatprep.subr.mxu0 0.0
    %750 = vmatpush1.msra.mxu0 0.0
    %751 = vmatprep.subr.mxu0 0.0
    %752 = vmatpush1.msra.mxu0 0.0
    %753 = vmatprep.subr.mxu0 0.0
    %754 = vmatpush1.msra.mxu0 0.0
    %755 = vmatprep.subr.mxu0 0.0
    %756 = vmatpush1.msra.mxu0 0.0
    %757 = vmatprep.subr.mxu0 0.0
    %758 = vmatpush1.msra.mxu0 0.0
    %759 = vmatprep.subr.mxu0 0.0
    %760 = vmatpush1.msra.mxu0 0.0
    %761 = vmatprep.subr.mxu0 0.0
    %762 = vmatpush1.msra.mxu0 0.0
    %763 = vmatprep.subr.mxu0 0.0
    %764 = vmatpush1.msra.mxu0 0.0
    %765 = vmatprep.subr.mxu0 0.0
    %766 = vmatpush1.msra.mxu0 0.0
    %767 = vmatprep.subr.mxu0 0.0
    %768 = vmatpush1.msra.mxu0 0.0
    %769 = vmatprep.subr.mxu0 0.0
    %770 = vmatpush1.msra.mxu0 0.0
    %771 = vmatprep.subr.mxu0 0.0
    %772 = vmatpush1.msra.mxu0 0.0
    %773 = vmatprep.subr.mxu0 0.0
    %774 = vmatpush1.msra.mxu0 0.0
    %775 = vmatprep.subr.mxu0 0.0
    %776 = vmatpush1.msra.mxu0 0.0
    %777 = vmatprep.subr.mxu0 0.0
    %778 = vmatpush1.msra.mxu0 0.0
    %779 = vmatprep.subr.mxu0 0.0
    %780 = vmatpush1.msra.mxu0 0.0
    %781 = vmatprep.subr.mxu0 0.0
    %782 = vmatpush1.msra.mxu0 0.0
    %783 = vmatprep.subr.mxu0 0.0
    %784 = vmatpush1.msra.mxu0 0.0
    %785 = vmatprep.subr.mxu0 0.0
    %786 = vmatpush1.msra.mxu0 0.0
    %787 = vmatprep.subr.mxu0 0.0
    %788 = vmatpush1.msra.mxu0 0.0
    %789 = vmatprep.subr.mxu0 0.0
    %790 = vmatpush1.msra.mxu0 0.0
    %791 = vmatprep.subr.mxu0 0.0
    %792 = vmatpush1.msra.mxu0 0.0
    %793 = vmatprep.mubr.f32.mxu0 0.0
    %794 = vmatmul.mubr.f32.gmra.mrb[0].mxu0 %v727
    %v795 = vpop.f32.mrb[0].mxu0
    %v796 = vadd.f32 0.0, %v795
    %v797 = vpop.f32.mrb[0].mxu0
    %798 = vdwg.mxu0
    %v799 = vadd.f32 %v726, %v796
    %v800 = vxor.u32 %v799, 2147483648
    %v801 = vmul.f32 %v800, 1.442695
    %v802 = vpow.pop %v801
    %v803 = vadd.f32 %v802, 1.0
    %v804 = vrcp.pop %v803
    %v805 = vmul.f32 1.0, %v804
    %v806 = vtanh.pop %v799
    %v807 = vmul.f32 %v805, %v712
    %809 = vrot.lane.b32.xlu0 %v806, 96
    %v810 = vpop.permute.xlu0 %809
    %v812 = vmul.f32 %v805, %v810
    %814 = vrot.lane.b32.xlu0 %v812, 16
    %v815 = vpop.permute.xlu0 %814
    %v817 = vadd.f32 %v807, %v815
    %v818 = vtanh.pop %v817
    %820 = vrot.lane.b32.xlu0 %v818, 32
    %v821 = vpop.permute.xlu0 %820
    %v823 = vmul.f32 %v805, %v821
    %825 = vrot.lane.b32.xlu0 %v823, 80
    %v826 = vpop.permute.xlu0 %825
    %s828 = scalar_lea.vmem [#allocation3], 40
    %829 = vst.msk [vmem:[%s828] sm:$0xff] %vm197, %v826
    %s830 = scalar_lea.vmem [#allocation2], 48
    %v831 = vld [vmem:[%s830] sm:$0xff]
    %v832 = vsel %vm197, %v826, 0
    %834 = vmatprep.subr.mxu0 0.0
    %835 = vmatpush1.msra.mxu0 %v192
    %836 = vmatprep.subr.mxu0 0.0
    %837 = vmatpush1.msra.mxu0 %v193
    %838 = vmatprep.subr.mxu0 0.0
    %839 = vmatpush1.msra.mxu0 0.0
    %840 = vmatprep.subr.mxu0 0.0
    %841 = vmatpush1.msra.mxu0 0.0
    %842 = vmatprep.subr.mxu0 0.0
    %843 = vmatpush1.msra.mxu0 0.0
    %844 = vmatprep.subr.mxu0 0.0
    %845 = vmatpush1.msra.mxu0 0.0
    %846 = vmatprep.subr.mxu0 0.0
    %847 = vmatpush1.msra.mxu0 0.0
    %848 = vmatprep.subr.mxu0 0.0
    %849 = vmatpush1.msra.mxu0 0.0
    %850 = vmatprep.subr.mxu0 0.0
    %851 = vmatpush1.msra.mxu0 0.0
    %852 = vmatprep.subr.mxu0 0.0
    %853 = vmatpush1.msra.mxu0 0.0
    %854 = vmatprep.subr.mxu0 0.0
    %855 = vmatpush1.msra.mxu0 0.0
    %856 = vmatprep.subr.mxu0 0.0
    %857 = vmatpush1.msra.mxu0 0.0
    %858 = vmatprep.subr.mxu0 0.0
    %859 = vmatpush1.msra.mxu0 0.0
    %860 = vmatprep.subr.mxu0 0.0
    %861 = vmatpush1.msra.mxu0 0.0
    %862 = vmatprep.subr.mxu0 0.0
    %863 = vmatpush1.msra.mxu0 0.0
    %864 = vmatprep.subr.mxu0 0.0
    %865 = vmatpush1.msra.mxu0 0.0
    %866 = vmatprep.subr.mxu0 0.0
    %867 = vmatpush1.msra.mxu0 0.0
    %868 = vmatprep.subr.mxu0 0.0
    %869 = vmatpush1.msra.mxu0 0.0
    %870 = vmatprep.subr.mxu0 0.0
    %871 = vmatpush1.msra.mxu0 0.0
    %872 = vmatprep.subr.mxu0 0.0
    %873 = vmatpush1.msra.mxu0 0.0
    %874 = vmatprep.subr.mxu0 0.0
    %875 = vmatpush1.msra.mxu0 0.0
    %876 = vmatprep.subr.mxu0 0.0
    %877 = vmatpush1.msra.mxu0 0.0
    %878 = vmatprep.subr.mxu0 0.0
    %879 = vmatpush1.msra.mxu0 0.0
    %880 = vmatprep.subr.mxu0 0.0
    %881 = vmatpush1.msra.mxu0 0.0
    %882 = vmatprep.subr.mxu0 0.0
    %883 = vmatpush1.msra.mxu0 0.0
    %884 = vmatprep.subr.mxu0 0.0
    %885 = vmatpush1.msra.mxu0 0.0
    %886 = vmatprep.subr.mxu0 0.0
    %887 = vmatpush1.msra.mxu0 0.0
    %888 = vmatprep.subr.mxu0 0.0
    %889 = vmatpush1.msra.mxu0 0.0
    %890 = vmatprep.subr.mxu0 0.0
    %891 = vmatpush1.msra.mxu0 0.0
    %892 = vmatprep.subr.mxu0 0.0
    %893 = vmatpush1.msra.mxu0 0.0
    %894 = vmatprep.subr.mxu0 0.0
    %895 = vmatpush1.msra.mxu0 0.0
    %896 = vmatprep.subr.mxu0 0.0
    %897 = vmatpush1.msra.mxu0 0.0
    %898 = vmatprep.mubr.f32.mxu0 0.0
    %899 = vmatmul.mubr.f32.gmra.mrb[0].mxu0 %v832
    %v900 = vpop.f32.mrb[0].mxu0
    %v901 = vadd.f32 0.0, %v900
    %v902 = vpop.f32.mrb[0].mxu0
    %903 = vdwg.mxu0
    %v904 = vadd.f32 %v831, %v901
    %v905 = vxor.u32 %v904, 2147483648
    %v906 = vmul.f32 %v905, 1.442695
    %v907 = vpow.pop %v906
    %v908 = vadd.f32 %v907, 1.0
    %v909 = vrcp.pop %v908
    %v910 = vmul.f32 1.0, %v909
    %v911 = vtanh.pop %v904
    %v912 = vmul.f32 %v910, %v817
    %914 = vrot.lane.b32.xlu0 %v911, 96
    %v915 = vpop.permute.xlu0 %914
    %v917 = vmul.f32 %v910, %v915
    %919 = vrot.lane.b32.xlu0 %v917, 16
    %v920 = vpop.permute.xlu0 %919
    %v922 = vadd.f32 %v912, %v920
    %v923 = vtanh.pop %v922
    %925 = vrot.lane.b32.xlu0 %v923, 32
    %v926 = vpop.permute.xlu0 %925
    %v928 = vmul.f32 %v910, %v926
    %930 = vrot.lane.b32.xlu0 %v928, 80
    %v931 = vpop.permute.xlu0 %930
    %s933 = scalar_lea.vmem [#allocation3], 48
    %934 = vst.msk [vmem:[%s933] sm:$0xff] %vm197, %v931
    %s935 = scalar_lea.vmem [#allocation2], 56
    %v936 = vld [vmem:[%s935] sm:$0xff]
    %v937 = vsel %vm197, %v931, 0
    %939 = vmatprep.subr.mxu0 0.0
    %940 = vmatpush1.msra.mxu0 %v192
    %941 = vmatprep.subr.mxu0 0.0
    %942 = vmatpush1.msra.mxu0 %v193
    %943 = vmatprep.subr.mxu0 0.0
    %944 = vmatpush1.msra.mxu0 0.0
    %945 = vmatprep.subr.mxu0 0.0
    %946 = vmatpush1.msra.mxu0 0.0
    %947 = vmatprep.subr.mxu0 0.0
    %948 = vmatpush1.msra.mxu0 0.0
    %949 = vmatprep.subr.mxu0 0.0
    %950 = vmatpush1.msra.mxu0 0.0
    %951 = vmatprep.subr.mxu0 0.0
    %952 = vmatpush1.msra.mxu0 0.0
    %953 = vmatprep.subr.mxu0 0.0
    %954 = vmatpush1.msra.mxu0 0.0
    %955 = vmatprep.subr.mxu0 0.0
    %956 = vmatpush1.msra.mxu0 0.0
    %957 = vmatprep.subr.mxu0 0.0
    %958 = vmatpush1.msra.mxu0 0.0
    %959 = vmatprep.subr.mxu0 0.0
    %960 = vmatpush1.msra.mxu0 0.0
    %961 = vmatprep.subr.mxu0 0.0
    %962 = vmatpush1.msra.mxu0 0.0
    %963 = vmatprep.subr.mxu0 0.0
    %964 = vmatpush1.msra.mxu0 0.0
    %965 = vmatprep.subr.mxu0 0.0
    %966 = vmatpush1.msra.mxu0 0.0
    %967 = vmatprep.subr.mxu0 0.0
    %968 = vmatpush1.msra.mxu0 0.0
    %969 = vmatprep.subr.mxu0 0.0
    %970 = vmatpush1.msra.mxu0 0.0
    %971 = vmatprep.subr.mxu0 0.0
    %972 = vmatpush1.msra.mxu0 0.0
    %973 = vmatprep.subr.mxu0 0.0
    %974 = vmatpush1.msra.mxu0 0.0
    %975 = vmatprep.subr.mxu0 0.0
    %976 = vmatpush1.msra.mxu0 0.0
    %977 = vmatprep.subr.mxu0 0.0
    %978 = vmatpush1.msra.mxu0 0.0
    %979 = vmatprep.subr.mxu0 0.0
    %980 = vmatpush1.msra.mxu0 0.0
    %981 = vmatprep.subr.mxu0 0.0
    %982 = vmatpush1.msra.mxu0 0.0
    %983 = vmatprep.subr.mxu0 0.0
    %984 = vmatpush1.msra.mxu0 0.0
    %985 = vmatprep.subr.mxu0 0.0
    %986 = vmatpush1.msra.mxu0 0.0
    %987 = vmatprep.subr.mxu0 0.0
    %988 = vmatpush1.msra.mxu0 0.0
    %989 = vmatprep.subr.mxu0 0.0
    %990 = vmatpush1.msra.mxu0 0.0
    %991 = vmatprep.subr.mxu0 0.0
    %992 = vmatpush1.msra.mxu0 0.0
    %993 = vmatprep.subr.mxu0 0.0
    %994 = vmatpush1.msra.mxu0 0.0
    %995 = vmatprep.subr.mxu0 0.0
    %996 = vmatpush1.msra.mxu0 0.0
    %997 = vmatprep.subr.mxu0 0.0
    %998 = vmatpush1.msra.mxu0 0.0
    %999 = vmatprep.subr.mxu0 0.0
    %1000 = vmatpush1.msra.mxu0 0.0
    %1001 = vmatprep.subr.mxu0 0.0
    %1002 = vmatpush1.msra.mxu0 0.0
    %1003 = vmatprep.mubr.f32.mxu0 0.0
    %1004 = vmatmul.mubr.f32.gmra.mrb[0].mxu0 %v937
    %v1005 = vpop.f32.mrb[0].mxu0
    %v1006 = vadd.f32 0.0, %v1005
    %v1007 = vpop.f32.mrb[0].mxu0
    %1008 = vdwg.mxu0
    %v1009 = vadd.f32 %v936, %v1006
    %v1010 = vxor.u32 %v1009, 2147483648
    %v1011 = vmul.f32 %v1010, 1.442695
    %v1012 = vpow.pop %v1011
    %v1013 = vadd.f32 %v1012, 1.0
    %v1014 = vrcp.pop %v1013
    %v1015 = vmul.f32 1.0, %v1014
    %v1016 = vtanh.pop %v1009
    %v1017 = vmul.f32 %v1015, %v922
    %1019 = vrot.lane.b32.xlu0 %v1016, 96
    %v1020 = vpop.permute.xlu0 %1019
    %v1022 = vmul.f32 %v1015, %v1020
    %1024 = vrot.lane.b32.xlu0 %v1022, 16
    %v1025 = vpop.permute.xlu0 %1024
    %v1027 = vadd.f32 %v1017, %v1025
    %v1028 = vtanh.pop %v1027
    %1030 = vrot.lane.b32.xlu0 %v1028, 32
    %v1031 = vpop.permute.xlu0 %1030
    %v1033 = vmul.f32 %v1015, %v1031
    %1035 = vrot.lane.b32.xlu0 %v1033, 80
    %v1036 = vpop.permute.xlu0 %1035
    %s1038 = scalar_lea.vmem [#allocation3], 56
    %1039 = vst.msk [vmem:[%s1038] sm:$0xff] %vm197, %v1036
    %1040 = vst.msk [vmem:[#allocation4] sm:$0xff] %vm197, %v1036
    %1042 = vrot.lane.b32.xlu0 %v1027, 112
    %v1043 = vpop.permute.xlu0 %1042
    %1045 = vst.msk [vmem:[#allocation5] sm:$0xff] %vm197, %v1043
    %v1046 = vld [vmem:[%s4] sm:$0x1]
    %v1047 = vld [vmem:[#allocation3] sm:$0xff]
    %v1048 = vld [vmem:[#allocation3 + $0x8] sm:$0xff]
    %v1049 = vld [vmem:[#allocation3 + $0x10] sm:$0xff]
    %v1050 = vld [vmem:[#allocation3 + $0x18] sm:$0xff]
    %v1051 = vld [vmem:[#allocation3 + $0x20] sm:$0xff]
    %v1052 = vld [vmem:[#allocation3 + $0x28] sm:$0xff]
    %v1053 = vld [vmem:[#allocation3 + $0x30] sm:$0xff]
    %v1054 = vld [vmem:[#allocation3 + $0x38] sm:$0xff]
    %v1055 = vld [vmem:[#allocation6] sm:$0x1]
    %1057 = vset.pattern.permute.xlu0 0
    %1058 = vperm.xlu0 %1057, %v1055
    %v1059 = vpop.permute.xlu0 %1058
    %v1061 = vlaneseq
    %v1062 = vshrl.u32 %v1061, 7
    %v1063 = vsub.s32 0, %v1062
    %v1064 = vrot.slane %v1059, %v1063
    %v1066 = vsel %vm197, %v1046, 0
    %v1069 = vsel %vm197, %v1047, 0
    %v1072 = vsel %vm197, %v1048, 0
    %v1075 = vsel %vm197, %v1049, 0
    %v1078 = vsel %vm197, %v1050, 0
    %v1081 = vsel %vm197, %v1051, 0
    %v1084 = vsel %vm197, %v1052, 0
    %v1087 = vsel %vm197, %v1053, 0
    %v1090 = vsel %vm197, %v1054, 0
    %1092 = vmatprep.subr.mxu0 0.0
    %1093 = vmatpush1.xpose.msra.mxu0 %v1069
    %1094 = vmatprep.subr.mxu0 0.0
    %1095 = vmatpush1.xpose.msra.mxu0 %v1072
    %1096 = vmatprep.subr.mxu0 0.0
    %1097 = vmatpush1.xpose.msra.mxu0 %v1075
    %1098 = vmatprep.subr.mxu0 0.0
    %1099 = vmatpush1.xpose.msra.mxu0 %v1078
    %1100 = vmatprep.subr.mxu0 0.0
    %1101 = vmatpush1.xpose.msra.mxu0 %v1081
    %1102 = vmatprep.subr.mxu0 0.0
    %1103 = vmatpush1.xpose.msra.mxu0 %v1084
    %1104 = vmatprep.subr.mxu0 0.0
    %1105 = vmatpush1.xpose.msra.mxu0 %v1087
    %1106 = vmatprep.subr.mxu0 0.0
    %1107 = vmatpush1.xpose.msra.mxu0 %v1090
    %1108 = vmatprep.subr.mxu0 0.0
    %1109 = vmatpush1.xpose.msra.mxu0 0.0
    %1110 = vmatprep.subr.mxu0 0.0
    %1111 = vmatpush1.xpose.msra.mxu0 0.0
    %1112 = vmatprep.subr.mxu0 0.0
    %1113 = vmatpush1.xpose.msra.mxu0 0.0
    %1114 = vmatprep.subr.mxu0 0.0
    %1115 = vmatpush1.xpose.msra.mxu0 0.0
    %1116 = vmatprep.subr.mxu0 0.0
    %1117 = vmatpush1.xpose.msra.mxu0 0.0
    %1118 = vmatprep.subr.mxu0 0.0
    %1119 = vmatpush1.xpose.msra.mxu0 0.0
    %1120 = vmatprep.subr.mxu0 0.0
    %1121 = vmatpush1.xpose.msra.mxu0 0.0
    %1122 = vmatprep.subr.mxu0 0.0
    %1123 = vmatpush1.xpose.msra.mxu0 0.0
    %1124 = vmatprep.subr.mxu0 0.0
    %1125 = vmatpush1.xpose.msra.mxu0 0.0
    %1126 = vmatprep.subr.mxu0 0.0
    %1127 = vmatpush1.xpose.msra.mxu0 0.0
    %1128 = vmatprep.subr.mxu0 0.0
    %1129 = vmatpush1.xpose.msra.mxu0 0.0
    %1130 = vmatprep.subr.mxu0 0.0
    %1131 = vmatpush1.xpose.msra.mxu0 0.0
    %1132 = vmatprep.subr.mxu0 0.0
    %1133 = vmatpush1.xpose.msra.mxu0 0.0
    %1134 = vmatprep.subr.mxu0 0.0
    %1135 = vmatpush1.xpose.msra.mxu0 0.0
    %1136 = vmatprep.subr.mxu0 0.0
    %1137 = vmatpush1.xpose.msra.mxu0 0.0
    %1138 = vmatprep.subr.mxu0 0.0
    %1139 = vmatpush1.xpose.msra.mxu0 0.0
    %1140 = vmatprep.subr.mxu0 0.0
    %1141 = vmatpush1.xpose.msra.mxu0 0.0
    %1142 = vmatprep.subr.mxu0 0.0
    %1143 = vmatpush1.xpose.msra.mxu0 0.0
    %1144 = vmatprep.subr.mxu0 0.0
    %1145 = vmatpush1.xpose.msra.mxu0 0.0
    %1146 = vmatprep.subr.mxu0 0.0
    %1147 = vmatpush1.xpose.msra.mxu0 0.0
    %1148 = vmatprep.subr.mxu0 0.0
    %1149 = vmatpush1.xpose.msra.mxu0 0.0
    %1150 = vmatprep.subr.mxu0 0.0
    %1151 = vmatpush1.xpose.msra.mxu0 0.0
    %1152 = vmatprep.subr.mxu0 0.0
    %1153 = vmatpush1.xpose.msra.mxu0 0.0
    %1154 = vmatprep.subr.mxu0 0.0
    %1155 = vmatpush1.xpose.msra.mxu0 0.0
    %1156 = vmatprep.mubr.f32.mxu0 0.0
    %1157 = vmatmul.mubr.f32.gmra.mrb[0].mxu0 %v1066
    %v1158 = vpop.f32.mrb[0].mxu0
    %v1159 = vadd.f32 %v1064, %v1158
    %v1160 = vpop.f32.mrb[0].mxu0
    %1161 = vdwg.mxu0
    %vm1162 = vcmask 516096
    %1163 = vst.msk [vmem:[#allocation7] sm:$0x1] %vm1162, %v1159
    // Predicated region
    $region30: #{tpu_custom_call.1} parent=1 // pred_check
      _
    $region31: #{tpu_custom_call.1} parent=1 // pred_check_branch
      %1165 = sbr.rel (0) target = $region33
    $region32: #{tpu_custom_call.1} parent=1 // pred_region
      %s1167 = ssub.s32 16, 16
      %1168 = vsyncadd [#allocation8], %s1167
      %s1170 = sshll.u32 [#allocation7], 4
      %s1171 = int_to_ptr.vmem [resolvable:$true] %s1170
      %1173 = dma.vmem_to_hbm [thread:$0]  %s1171, 16, %s6, [#allocation8]
    $region33: #{tpu_custom_call.1} parent=1 // pred_fallthru
      _
    // Predicated region
    $region34: #{tpu_custom_call.1} parent=1 // pred_check
      _
    $region35: #{tpu_custom_call.1} parent=1 // pred_check_branch
      %1175 = sbr.rel (0) target = $region37
    $region36: #{tpu_custom_call.1} parent=1 // pred_region
      %1176 = dma.done [#allocation8], 16
    $region37: #{tpu_custom_call.1} parent=1 // pred_fallthru
      _
    %1177 = vsyncpa [#allocation8], 1

</llo_original>
